<compile_context>
chip_gen: v6e
topology: v6e:2x2x1
jax: 0.10.0
libtpu: 0.0.40
codegen_flags: <defaults>
</compile_context>

<pallas_src>
import functools

import jax
import jax.numpy as jnp
from jax.experimental import pallas as pl
from jax.experimental.pallas import tpu as pltpu

EPS = 1e-5


def _resblock_kernel(x_ref, w1_ref, b1_ref, w2_ref, b2_ref, o_ref,
                     *, C, H, W, compute_dtype):
    HW = H * W

    x = x_ref[0]            # (C, HW) f32; row = channel, lane = h*W + w
    b1 = b1_ref[...]        # (C, 1) f32
    b2 = b2_ref[...]        # (C, 1) f32

    # Boundary masks over the flattened lane index p = h*W + w.  Built once at
    # the per-block (C, HW) shape and reused by both convolutions.
    lane = jax.lax.broadcasted_iota(jnp.int32, (C, HW), 1)
    col = lane % W
    w_first = col == 0              # w == 0
    w_last = col == W - 1           # w == W-1
    h_first = lane < W              # h == 0
    h_last = lane >= (H - 1) * W    # h == H-1

    def reflect_patches(y):
        """y: (C, HW).  Returns the 9 conv taps (dh, dw in {-1,0,1}) with
        reflection padding, via lane rolls (XLU) + boundary masks.  Roll
        wrap-around only happens at masked boundary positions."""
        up = pltpu.roll(y, W, axis=1)         # value at (h-1, w) [interior]
        down = pltpu.roll(y, HW - W, axis=1)  # value at (h+1, w) [interior]
        rows = [
            jnp.where(h_first, down, up),     # dh = -1 (reflect row 1 at h==0)
            y,                                # dh =  0
            jnp.where(h_last, up, down),      # dh = +1 (reflect row H-2 at h==H-1)
        ]
        patches = []
        for r in rows:
            left = pltpu.roll(r, 1, axis=1)        # (h, w-1) [interior]
            right = pltpu.roll(r, HW - 1, axis=1)  # (h, w+1) [interior]
            patches.append(jnp.where(w_first, right, left))  # dw = -1
            patches.append(r)                                # dw =  0
            patches.append(jnp.where(w_last, left, right))   # dw = +1
        return patches  # list of 9 x (C, HW), ordered (kh, kw)

    def conv3x3(y, w_ref, b):
        """Reflect-padded 3x3 conv: 9 per-tap MXU dots accumulated in f32."""
        patches = reflect_patches(y.astype(compute_dtype))
        acc = jnp.zeros((C, HW), jnp.float32)
        for t in range(9):  # static unroll over taps
            acc = acc + jnp.dot(w_ref[t], patches[t],
                                preferred_element_type=jnp.float32)
        return acc + b

    def instance_norm(y):
        """Per-row (= per channel) normalization over the HW lanes.
        Two-pass variance (numerically stable); rsqrt runs on the EUP."""
        mean = jnp.mean(y, axis=1, keepdims=True)
        d = y - mean
        var = jnp.mean(d * d, axis=1, keepdims=True)
        return d * jax.lax.rsqrt(var + EPS)

    # conv1 -> instance norm -> ReLU
    h = jnp.maximum(instance_norm(conv3x3(x, w1_ref, b1)), 0.0)

    # TODO(synk): dropout branch (use_dropout=True) not implemented; the fixed
    # config uses use_dropout=False (and eval-mode Dropout is identity anyway).

    # reflect pad -> conv2 -> instance norm
    h2 = instance_norm(conv3x3(h, w2_ref, b2))

    # residual add + final ReLU (lane-dense full-width store)
    o_ref[0] = jnp.maximum(x + h2, 0.0).astype(o_ref.dtype)


@functools.partial(jax.jit, static_argnames=("compute_dtype",))
def resblock_forward(x, w1, b1, w2, b2, *, compute_dtype=jnp.bfloat16):
    """x: (N, C, H, W) f32; w*: (C, C, 3, 3); b*: (C,).  Returns NCHW f32."""
    N, C, H, W = x.shape
    HW = H * W

    # Lane-dense activation layout (free, contiguous reshape).
    x3 = x.reshape(N, C, HW)

    # Tap-major weight layout: w_taps[kh*3 + kw] = w[:, :, kh, kw] (Cout, Cin).
    def prep_w(w):
        return jnp.transpose(w, (2, 3, 0, 1)).reshape(9, C, C).astype(compute_dtype)

    w1t = prep_w(w1)
    w2t = prep_w(w2)
    b1c = b1.reshape(C, 1).astype(jnp.float32)
    b2c = b2.reshape(C, 1).astype(jnp.float32)

    kernel = functools.partial(_resblock_kernel, C=C, H=H, W=W,
                               compute_dtype=compute_dtype)

    w_bytes = 2 * 9 * C * C * jnp.dtype(compute_dtype).itemsize
    cost = pl.CostEstimate(
        flops=int(2 * N * 2 * 9 * C * C * HW),          # 2 convs, MACs * 2
        transcendentals=int(2 * N * C),                 # rsqrt per row per conv
        bytes_accessed=int(4 * 2 * N * C * HW + w_bytes + 4 * 2 * C))

    out3 = pl.pallas_call(
        kernel,
        out_shape=jax.ShapeDtypeStruct((N, C, HW), jnp.float32),
        grid=(N,),
        in_specs=[
            pl.BlockSpec((1, C, HW), lambda n: (n, 0, 0)),   # x: one sample/step
            pl.BlockSpec((9, C, C), lambda n: (0, 0, 0)),    # w1: constant block
            pl.BlockSpec((C, 1), lambda n: (0, 0)),          # b1: constant block
            pl.BlockSpec((9, C, C), lambda n: (0, 0, 0)),    # w2: constant block
            pl.BlockSpec((C, 1), lambda n: (0, 0)),          # b2: constant block
        ],
        out_specs=pl.BlockSpec((1, C, HW), lambda n: (n, 0, 0)),
        compiler_params=pltpu.CompilerParams(
            dimension_semantics=("parallel",)),              # megacore on v7x
        cost_estimate=cost,
    )(x3, w1t, b1c, w2t, b2c)

    return out3.reshape(N, C, H, W)


def _reference_forward(x, w1, b1, w2, b2):
    """Pure-JAX reference matching the PyTorch module semantics."""
    def conv(inp, w, b):
        p = jnp.pad(inp, ((0, 0), (0, 0), (1, 1), (1, 1)), mode="reflect")
        y = jax.lax.conv_general_dilated(
            p, w, window_strides=(1, 1), padding="VALID",
            dimension_numbers=("NCHW", "OIHW", "NCHW"))
        return y + b[None, :, None, None]

    def inorm(y):
        m = y.mean(axis=(2, 3), keepdims=True)
        v = ((y - m) ** 2).mean(axis=(2, 3), keepdims=True)
        return (y - m) * jax.lax.rsqrt(v + EPS)

    h = jax.nn.relu(inorm(conv(x, w1, b1)))
    h = inorm(conv(h, w2, b2))
    return jax.nn.relu(x + h)


if __name__ == "__main__":
    def run_case(N, C, H, W, compute_dtype, atol, rtol):
        key = jax.random.PRNGKey(0)
        kx, k1, kb1, k2, kb2 = jax.random.split(key, 5)
        x = jax.random.normal(kx, (N, C, H, W), dtype=jnp.float32)
        # Deterministic init mimicking PyTorch Conv2d default (+-1/sqrt(fan_in)).
        fan_in = C * 3 * 3
        bound = 1.0 / (fan_in ** 0.5)
        w1 = jax.random.uniform(k1, (C, C, 3, 3), jnp.float32, -bound, bound)
        b1 = jax.random.uniform(kb1, (C,), jnp.float32, -bound, bound)
        w2 = jax.random.uniform(k2, (C, C, 3, 3), jnp.float32, -bound, bound)
        b2 = jax.random.uniform(kb2, (C,), jnp.float32, -bound, bound)

        out = jax.block_until_ready(
            resblock_forward(x, w1, b1, w2, b2, compute_dtype=compute_dtype))
        ref = jax.block_until_ready(_reference_forward(x, w1, b1, w2, b2))

        assert out.shape == (N, C, H, W)
        max_err = float(jnp.max(jnp.abs(out - ref)))
        assert jnp.allclose(out, ref, atol=atol, rtol=rtol), (
            (N, C, H, W), str(compute_dtype), max_err)

    # Tight correctness gate: exact f32 MXU path at the module's demo size.
    run_case(2, 4, 16, 16, jnp.float32, atol=5e-4, rtol=5e-4)
    # Default fast path: bf16 dot operands, f32 accumulation/norm/residual.
    # Tolerance relaxed deliberately for bf16 operand rounding.
    run_case(2, 4, 16, 16, jnp.bfloat16, atol=1e-1, rtol=1e-1)
    # A C-multiple-of-8 shape exercising the aligned-sublane path + the grid.
    run_case(2, 32, 32, 32, jnp.bfloat16, atol=1e-1, rtol=1e-1)

    print("KERNEL_OK")
</pallas_src>

<mosaic_0001>
module attributes {stable_mosaic.version = 11 : i64} {
  func.func @_resblock_kernel(%arg0: i32, %arg1: memref<1x4x256xf32, #tpu.memory_space<vmem>>, %arg2: memref<9x4x4xf32, #tpu.memory_space<vmem>>, %arg3: memref<4x1xf32, #tpu.memory_space<vmem>>, %arg4: memref<9x4x4xf32, #tpu.memory_space<vmem>>, %arg5: memref<4x1xf32, #tpu.memory_space<vmem>>, %arg6: memref<1x4x256xf32, #tpu.memory_space<vmem>>) attributes {dimension_semantics = [#tpu.dimension_semantics<parallel>], iteration_bounds = array<i64: 2>, scalar_prefetch = 0 : i64, scratch_operands = 0 : i64, tpu.core_type = #tpu.core_type<tc>, window_params = [{transform_indices = @transform_0, window_bounds = array<i64: 1, 4, 256>}, {pipeline_mode = #tpu.pipeline_mode<synchronous>, transform_indices = @transform_1, window_bounds = array<i64: 9, 4, 4>}, {pipeline_mode = #tpu.pipeline_mode<synchronous>, transform_indices = @transform_2, window_bounds = array<i64: 4, 1>}, {pipeline_mode = #tpu.pipeline_mode<synchronous>, transform_indices = @transform_3, window_bounds = array<i64: 9, 4, 4>}, {pipeline_mode = #tpu.pipeline_mode<synchronous>, transform_indices = @transform_4, window_bounds = array<i64: 4, 1>}, {transform_indices = @transform_5, window_bounds = array<i64: 1, 4, 256>}]} {
    %c0 = arith.constant 0 : index
    %c0_0 = arith.constant 0 : index
    %c0_1 = arith.constant 0 : index
    %0 = vector.load %arg1[%c0, %c0_0, %c0_1] : memref<1x4x256xf32, #tpu.memory_space<vmem>>, vector<1x4x256xf32>
    %1 = vector.shape_cast %0 : vector<1x4x256xf32> to vector<4x256xf32>
    %c0_2 = arith.constant 0 : index
    %c0_3 = arith.constant 0 : index
    %2 = vector.load %arg3[%c0_2, %c0_3] : memref<4x1xf32, #tpu.memory_space<vmem>>, vector<4x1xf32>
    %c0_4 = arith.constant 0 : index
    %c0_5 = arith.constant 0 : index
    %3 = vector.load %arg5[%c0_4, %c0_5] : memref<4x1xf32, #tpu.memory_space<vmem>>, vector<4x1xf32>
    %4 = tpu.iota {dimensions = array<i32: 1>} : vector<4x256xi32>
    %c16_i32 = arith.constant 16 : i32
    %c0_i32 = arith.constant 0 : i32
    %5 = arith.cmpi eq, %c16_i32, %c0_i32 : i32
    %c1_i32 = arith.constant 1 : i32
    %6 = arith.select %5, %c1_i32, %c16_i32 : i32
    %7 = vector.broadcast %6 : i32 to vector<4x256xi32>
    %8 = arith.remsi %4, %7 : vector<4x256xi32>
    %c0_i32_6 = arith.constant 0 : i32
    %9 = vector.broadcast %c0_i32_6 : i32 to vector<4x256xi32>
    %10 = arith.cmpi ne, %8, %9 : vector<4x256xi32>
    %c0_i32_7 = arith.constant 0 : i32
    %11 = vector.broadcast %c0_i32_7 : i32 to vector<4x256xi32>
    %12 = arith.cmpi slt, %8, %11 : vector<4x256xi32>
    %c0_i32_8 = arith.constant 0 : i32
    %13 = arith.cmpi slt, %6, %c0_i32_8 : i32
    %14 = vector.broadcast %13 : i1 to vector<4x256xi1>
    %15 = vector.broadcast %14 : vector<4x256xi1> to vector<4x256xi1>
    %16 = arith.xori %12, %15 : vector<4x256xi1>
    %17 = arith.andi %16, %10 : vector<4x256xi1>
    %18 = vector.broadcast %6 : i32 to vector<4x256xi32>
    %19 = arith.addi %8, %18 : vector<4x256xi32>
    %20 = arith.select %17, %19, %8 : vector<4x256xi1>, vector<4x256xi32>
    %c0_i32_9 = arith.constant 0 : i32
    %21 = vector.broadcast %c0_i32_9 : i32 to vector<4x256xi32>
    %22 = arith.cmpi eq, %20, %21 : vector<4x256xi32>
    %c15_i32 = arith.constant 15 : i32
    %23 = vector.broadcast %c15_i32 : i32 to vector<4x256xi32>
    %24 = arith.cmpi eq, %20, %23 : vector<4x256xi32>
    %c16_i32_10 = arith.constant 16 : i32
    %25 = vector.broadcast %c16_i32_10 : i32 to vector<4x256xi32>
    %26 = arith.cmpi slt, %4, %25 : vector<4x256xi32>
    %c240_i32 = arith.constant 240 : i32
    %27 = vector.broadcast %c240_i32 : i32 to vector<4x256xi32>
    %28 = arith.cmpi sge, %4, %27 : vector<4x256xi32>
    %c16_i32_11 = arith.constant 16 : i32
    %29 = tpu.dynamic_rotate %1 by %c16_i32_11 dim 1 : vector<4x256xf32>, i32 -> vector<4x256xf32>
    %c240_i32_12 = arith.constant 240 : i32
    %30 = tpu.dynamic_rotate %1 by %c240_i32_12 dim 1 : vector<4x256xf32>, i32 -> vector<4x256xf32>
    %31 = arith.select %26, %30, %29 : vector<4x256xi1>, vector<4x256xf32>
    %32 = arith.select %28, %29, %30 : vector<4x256xi1>, vector<4x256xf32>
    %c1_i32_13 = arith.constant 1 : i32
    %33 = tpu.dynamic_rotate %31 by %c1_i32_13 dim 1 : vector<4x256xf32>, i32 -> vector<4x256xf32>
    %c255_i32 = arith.constant 255 : i32
    %34 = tpu.dynamic_rotate %31 by %c255_i32 dim 1 : vector<4x256xf32>, i32 -> vector<4x256xf32>
    %35 = arith.select %22, %34, %33 : vector<4x256xi1>, vector<4x256xf32>
    %36 = arith.select %24, %33, %34 : vector<4x256xi1>, vector<4x256xf32>
    %c1_i32_14 = arith.constant 1 : i32
    %37 = tpu.dynamic_rotate %1 by %c1_i32_14 dim 1 : vector<4x256xf32>, i32 -> vector<4x256xf32>
    %c255_i32_15 = arith.constant 255 : i32
    %38 = tpu.dynamic_rotate %1 by %c255_i32_15 dim 1 : vector<4x256xf32>, i32 -> vector<4x256xf32>
    %39 = arith.select %22, %38, %37 : vector<4x256xi1>, vector<4x256xf32>
    %40 = arith.select %24, %37, %38 : vector<4x256xi1>, vector<4x256xf32>
    %c1_i32_16 = arith.constant 1 : i32
    %41 = tpu.dynamic_rotate %32 by %c1_i32_16 dim 1 : vector<4x256xf32>, i32 -> vector<4x256xf32>
    %c255_i32_17 = arith.constant 255 : i32
    %42 = tpu.dynamic_rotate %32 by %c255_i32_17 dim 1 : vector<4x256xf32>, i32 -> vector<4x256xf32>
    %43 = arith.select %22, %42, %41 : vector<4x256xi1>, vector<4x256xf32>
    %44 = arith.select %24, %41, %42 : vector<4x256xi1>, vector<4x256xf32>
    %cst = arith.constant 0.000000e+00 : f32
    %45 = vector.broadcast %cst : f32 to vector<4x256xf32>
    %c0_18 = arith.constant 0 : index
    %c0_19 = arith.constant 0 : index
    %c0_20 = arith.constant 0 : index
    %46 = vector.load %arg2[%c0_18, %c0_19, %c0_20] : memref<9x4x4xf32, #tpu.memory_space<vmem>>, vector<1x4x4xf32>
    %47 = vector.shape_cast %46 : vector<1x4x4xf32> to vector<4x4xf32>
    %cst_21 = arith.constant dense<0.000000e+00> : vector<4x256xf32>
    %48 = tpu.matmul %47, %35, %cst_21 {dimension_numbers = #tpu.dot_dimension_numbers<[1], [0], [0], [1], [0, 0, 1, 1], [], []>} : vector<4x4xf32>, vector<4x256xf32>, vector<4x256xf32> -> vector<4x256xf32>
    %49 = arith.addf %45, %48 : vector<4x256xf32>
    %c1 = arith.constant 1 : index
    %c0_22 = arith.constant 0 : index
    %c0_23 = arith.constant 0 : index
    %50 = vector.load %arg2[%c1, %c0_22, %c0_23] : memref<9x4x4xf32, #tpu.memory_space<vmem>>, vector<1x4x4xf32>
    %51 = vector.shape_cast %50 : vector<1x4x4xf32> to vector<4x4xf32>
    %cst_24 = arith.constant dense<0.000000e+00> : vector<4x256xf32>
    %52 = tpu.matmul %51, %31, %cst_24 {dimension_numbers = #tpu.dot_dimension_numbers<[1], [0], [0], [1], [0, 0, 1, 1], [], []>} : vector<4x4xf32>, vector<4x256xf32>, vector<4x256xf32> -> vector<4x256xf32>
    %53 = arith.addf %49, %52 : vector<4x256xf32>
    %c2 = arith.constant 2 : index
    %c0_25 = arith.constant 0 : index
    %c0_26 = arith.constant 0 : index
    %54 = vector.load %arg2[%c2, %c0_25, %c0_26] : memref<9x4x4xf32, #tpu.memory_space<vmem>>, vector<1x4x4xf32>
    %55 = vector.shape_cast %54 : vector<1x4x4xf32> to vector<4x4xf32>
    %cst_27 = arith.constant dense<0.000000e+00> : vector<4x256xf32>
    %56 = tpu.matmul %55, %36, %cst_27 {dimension_numbers = #tpu.dot_dimension_numbers<[1], [0], [0], [1], [0, 0, 1, 1], [], []>} : vector<4x4xf32>, vector<4x256xf32>, vector<4x256xf32> -> vector<4x256xf32>
    %57 = arith.addf %53, %56 : vector<4x256xf32>
    %c3 = arith.constant 3 : index
    %c0_28 = arith.constant 0 : index
    %c0_29 = arith.constant 0 : index
    %58 = vector.load %arg2[%c3, %c0_28, %c0_29] : memref<9x4x4xf32, #tpu.memory_space<vmem>>, vector<1x4x4xf32>
    %59 = vector.shape_cast %58 : vector<1x4x4xf32> to vector<4x4xf32>
    %cst_30 = arith.constant dense<0.000000e+00> : vector<4x256xf32>
    %60 = tpu.matmul %59, %39, %cst_30 {dimension_numbers = #tpu.dot_dimension_numbers<[1], [0], [0], [1], [0, 0, 1, 1], [], []>} : vector<4x4xf32>, vector<4x256xf32>, vector<4x256xf32> -> vector<4x256xf32>
    %61 = arith.addf %57, %60 : vector<4x256xf32>
    %c4 = arith.constant 4 : index
    %c0_31 = arith.constant 0 : index
    %c0_32 = arith.constant 0 : index
    %62 = vector.load %arg2[%c4, %c0_31, %c0_32] : memref<9x4x4xf32, #tpu.memory_space<vmem>>, vector<1x4x4xf32>
    %63 = vector.shape_cast %62 : vector<1x4x4xf32> to vector<4x4xf32>
    %cst_33 = arith.constant dense<0.000000e+00> : vector<4x256xf32>
    %64 = tpu.matmul %63, %1, %cst_33 {dimension_numbers = #tpu.dot_dimension_numbers<[1], [0], [0], [1], [0, 0, 1, 1], [], []>} : vector<4x4xf32>, vector<4x256xf32>, vector<4x256xf32> -> vector<4x256xf32>
    %65 = arith.addf %61, %64 : vector<4x256xf32>
    %c5 = arith.constant 5 : index
    %c0_34 = arith.constant 0 : index
    %c0_35 = arith.constant 0 : index
    %66 = vector.load %arg2[%c5, %c0_34, %c0_35] : memref<9x4x4xf32, #tpu.memory_space<vmem>>, vector<1x4x4xf32>
    %67 = vector.shape_cast %66 : vector<1x4x4xf32> to vector<4x4xf32>
    %cst_36 = arith.constant dense<0.000000e+00> : vector<4x256xf32>
    %68 = tpu.matmul %67, %40, %cst_36 {dimension_numbers = #tpu.dot_dimension_numbers<[1], [0], [0], [1], [0, 0, 1, 1], [], []>} : vector<4x4xf32>, vector<4x256xf32>, vector<4x256xf32> -> vector<4x256xf32>
    %69 = arith.addf %65, %68 : vector<4x256xf32>
    %c6 = arith.constant 6 : index
    %c0_37 = arith.constant 0 : index
    %c0_38 = arith.constant 0 : index
    %70 = vector.load %arg2[%c6, %c0_37, %c0_38] : memref<9x4x4xf32, #tpu.memory_space<vmem>>, vector<1x4x4xf32>
    %71 = vector.shape_cast %70 : vector<1x4x4xf32> to vector<4x4xf32>
    %cst_39 = arith.constant dense<0.000000e+00> : vector<4x256xf32>
    %72 = tpu.matmul %71, %43, %cst_39 {dimension_numbers = #tpu.dot_dimension_numbers<[1], [0], [0], [1], [0, 0, 1, 1], [], []>} : vector<4x4xf32>, vector<4x256xf32>, vector<4x256xf32> -> vector<4x256xf32>
    %73 = arith.addf %69, %72 : vector<4x256xf32>
    %c7 = arith.constant 7 : index
    %c0_40 = arith.constant 0 : index
    %c0_41 = arith.constant 0 : index
    %74 = vector.load %arg2[%c7, %c0_40, %c0_41] : memref<9x4x4xf32, #tpu.memory_space<vmem>>, vector<1x4x4xf32>
    %75 = vector.shape_cast %74 : vector<1x4x4xf32> to vector<4x4xf32>
    %cst_42 = arith.constant dense<0.000000e+00> : vector<4x256xf32>
    %76 = tpu.matmul %75, %32, %cst_42 {dimension_numbers = #tpu.dot_dimension_numbers<[1], [0], [0], [1], [0, 0, 1, 1], [], []>} : vector<4x4xf32>, vector<4x256xf32>, vector<4x256xf32> -> vector<4x256xf32>
    %77 = arith.addf %73, %76 : vector<4x256xf32>
    %c8 = arith.constant 8 : index
    %c0_43 = arith.constant 0 : index
    %c0_44 = arith.constant 0 : index
    %78 = vector.load %arg2[%c8, %c0_43, %c0_44] : memref<9x4x4xf32, #tpu.memory_space<vmem>>, vector<1x4x4xf32>
    %79 = vector.shape_cast %78 : vector<1x4x4xf32> to vector<4x4xf32>
    %cst_45 = arith.constant dense<0.000000e+00> : vector<4x256xf32>
    %80 = tpu.matmul %79, %44, %cst_45 {dimension_numbers = #tpu.dot_dimension_numbers<[1], [0], [0], [1], [0, 0, 1, 1], [], []>} : vector<4x4xf32>, vector<4x256xf32>, vector<4x256xf32> -> vector<4x256xf32>
    %81 = arith.addf %77, %80 : vector<4x256xf32>
    %82 = vector.broadcast %2 : vector<4x1xf32> to vector<4x256xf32>
    %83 = arith.addf %81, %82 : vector<4x256xf32>
    %cst_46 = arith.constant dense<0.000000e+00> : vector<4xf32>
    %84 = vector.multi_reduction <add>, %83, %cst_46 [1] : vector<4x256xf32> to vector<4xf32>
    %85 = vector.shape_cast %84 : vector<4xf32> to vector<4x1xf32>
    %cst_47 = arith.constant 2.560000e+02 : f32
    %86 = vector.broadcast %cst_47 : f32 to vector<4x1xf32>
    %87 = arith.divf %85, %86 : vector<4x1xf32>
    %88 = vector.broadcast %87 : vector<4x1xf32> to vector<4x256xf32>
    %89 = arith.subf %83, %88 : vector<4x256xf32>
    %90 = arith.mulf %89, %89 : vector<4x256xf32>
    %cst_48 = arith.constant dense<0.000000e+00> : vector<4xf32>
    %91 = vector.multi_reduction <add>, %90, %cst_48 [1] : vector<4x256xf32> to vector<4xf32>
    %92 = vector.shape_cast %91 : vector<4xf32> to vector<4x1xf32>
    %cst_49 = arith.constant 2.560000e+02 : f32
    %93 = vector.broadcast %cst_49 : f32 to vector<4x1xf32>
    %94 = arith.divf %92, %93 : vector<4x1xf32>
    %cst_50 = arith.constant 9.99999974E-6 : f32
    %95 = vector.broadcast %cst_50 : f32 to vector<4x1xf32>
    %96 = arith.addf %94, %95 : vector<4x1xf32>
    %97 = math.rsqrt %96 : vector<4x1xf32>
    %98 = vector.broadcast %97 : vector<4x1xf32> to vector<4x256xf32>
    %99 = arith.mulf %89, %98 : vector<4x256xf32>
    %cst_51 = arith.constant 0.000000e+00 : f32
    %100 = vector.broadcast %cst_51 : f32 to vector<4x256xf32>
    %101 = arith.maximumf %99, %100 : vector<4x256xf32>
    %c16_i32_52 = arith.constant 16 : i32
    %102 = tpu.dynamic_rotate %101 by %c16_i32_52 dim 1 : vector<4x256xf32>, i32 -> vector<4x256xf32>
    %c240_i32_53 = arith.constant 240 : i32
    %103 = tpu.dynamic_rotate %101 by %c240_i32_53 dim 1 : vector<4x256xf32>, i32 -> vector<4x256xf32>
    %104 = arith.select %26, %103, %102 : vector<4x256xi1>, vector<4x256xf32>
    %105 = arith.select %28, %102, %103 : vector<4x256xi1>, vector<4x256xf32>
    %c1_i32_54 = arith.constant 1 : i32
    %106 = tpu.dynamic_rotate %104 by %c1_i32_54 dim 1 : vector<4x256xf32>, i32 -> vector<4x256xf32>
    %c255_i32_55 = arith.constant 255 : i32
    %107 = tpu.dynamic_rotate %104 by %c255_i32_55 dim 1 : vector<4x256xf32>, i32 -> vector<4x256xf32>
    %108 = arith.select %22, %107, %106 : vector<4x256xi1>, vector<4x256xf32>
    %109 = arith.select %24, %106, %107 : vector<4x256xi1>, vector<4x256xf32>
    %c1_i32_56 = arith.constant 1 : i32
    %110 = tpu.dynamic_rotate %101 by %c1_i32_56 dim 1 : vector<4x256xf32>, i32 -> vector<4x256xf32>
    %c255_i32_57 = arith.constant 255 : i32
    %111 = tpu.dynamic_rotate %101 by %c255_i32_57 dim 1 : vector<4x256xf32>, i32 -> vector<4x256xf32>
    %112 = arith.select %22, %111, %110 : vector<4x256xi1>, vector<4x256xf32>
    %113 = arith.select %24, %110, %111 : vector<4x256xi1>, vector<4x256xf32>
    %c1_i32_58 = arith.constant 1 : i32
    %114 = tpu.dynamic_rotate %105 by %c1_i32_58 dim 1 : vector<4x256xf32>, i32 -> vector<4x256xf32>
    %c255_i32_59 = arith.constant 255 : i32
    %115 = tpu.dynamic_rotate %105 by %c255_i32_59 dim 1 : vector<4x256xf32>, i32 -> vector<4x256xf32>
    %116 = arith.select %22, %115, %114 : vector<4x256xi1>, vector<4x256xf32>
    %117 = arith.select %24, %114, %115 : vector<4x256xi1>, vector<4x256xf32>
    %cst_60 = arith.constant 0.000000e+00 : f32
    %118 = vector.broadcast %cst_60 : f32 to vector<4x256xf32>
    %c0_61 = arith.constant 0 : index
    %c0_62 = arith.constant 0 : index
    %c0_63 = arith.constant 0 : index
    %119 = vector.load %arg4[%c0_61, %c0_62, %c0_63] : memref<9x4x4xf32, #tpu.memory_space<vmem>>, vector<1x4x4xf32>
    %120 = vector.shape_cast %119 : vector<1x4x4xf32> to vector<4x4xf32>
    %cst_64 = arith.constant dense<0.000000e+00> : vector<4x256xf32>
    %121 = tpu.matmul %120, %108, %cst_64 {dimension_numbers = #tpu.dot_dimension_numbers<[1], [0], [0], [1], [0, 0, 1, 1], [], []>} : vector<4x4xf32>, vector<4x256xf32>, vector<4x256xf32> -> vector<4x256xf32>
    %122 = arith.addf %118, %121 : vector<4x256xf32>
    %c1_65 = arith.constant 1 : index
    %c0_66 = arith.constant 0 : index
    %c0_67 = arith.constant 0 : index
    %123 = vector.load %arg4[%c1_65, %c0_66, %c0_67] : memref<9x4x4xf32, #tpu.memory_space<vmem>>, vector<1x4x4xf32>
    %124 = vector.shape_cast %123 : vector<1x4x4xf32> to vector<4x4xf32>
    %cst_68 = arith.constant dense<0.000000e+00> : vector<4x256xf32>
    %125 = tpu.matmul %124, %104, %cst_68 {dimension_numbers = #tpu.dot_dimension_numbers<[1], [0], [0], [1], [0, 0, 1, 1], [], []>} : vector<4x4xf32>, vector<4x256xf32>, vector<4x256xf32> -> vector<4x256xf32>
    %126 = arith.addf %122, %125 : vector<4x256xf32>
    %c2_69 = arith.constant 2 : index
    %c0_70 = arith.constant 0 : index
    %c0_71 = arith.constant 0 : index
    %127 = vector.load %arg4[%c2_69, %c0_70, %c0_71] : memref<9x4x4xf32, #tpu.memory_space<vmem>>, vector<1x4x4xf32>
    %128 = vector.shape_cast %127 : vector<1x4x4xf32> to vector<4x4xf32>
    %cst_72 = arith.constant dense<0.000000e+00> : vector<4x256xf32>
    %129 = tpu.matmul %128, %109, %cst_72 {dimension_numbers = #tpu.dot_dimension_numbers<[1], [0], [0], [1], [0, 0, 1, 1], [], []>} : vector<4x4xf32>, vector<4x256xf32>, vector<4x256xf32> -> vector<4x256xf32>
    %130 = arith.addf %126, %129 : vector<4x256xf32>
    %c3_73 = arith.constant 3 : index
    %c0_74 = arith.constant 0 : index
    %c0_75 = arith.constant 0 : index
    %131 = vector.load %arg4[%c3_73, %c0_74, %c0_75] : memref<9x4x4xf32, #tpu.memory_space<vmem>>, vector<1x4x4xf32>
    %132 = vector.shape_cast %131 : vector<1x4x4xf32> to vector<4x4xf32>
    %cst_76 = arith.constant dense<0.000000e+00> : vector<4x256xf32>
    %133 = tpu.matmul %132, %112, %cst_76 {dimension_numbers = #tpu.dot_dimension_numbers<[1], [0], [0], [1], [0, 0, 1, 1], [], []>} : vector<4x4xf32>, vector<4x256xf32>, vector<4x256xf32> -> vector<4x256xf32>
    %134 = arith.addf %130, %133 : vector<4x256xf32>
    %c4_77 = arith.constant 4 : index
    %c0_78 = arith.constant 0 : index
    %c0_79 = arith.constant 0 : index
    %135 = vector.load %arg4[%c4_77, %c0_78, %c0_79] : memref<9x4x4xf32, #tpu.memory_space<vmem>>, vector<1x4x4xf32>
    %136 = vector.shape_cast %135 : vector<1x4x4xf32> to vector<4x4xf32>
    %cst_80 = arith.constant dense<0.000000e+00> : vector<4x256xf32>
    %137 = tpu.matmul %136, %101, %cst_80 {dimension_numbers = #tpu.dot_dimension_numbers<[1], [0], [0], [1], [0, 0, 1, 1], [], []>} : vector<4x4xf32>, vector<4x256xf32>, vector<4x256xf32> -> vector<4x256xf32>
    %138 = arith.addf %134, %137 : vector<4x256xf32>
    %c5_81 = arith.constant 5 : index
    %c0_82 = arith.constant 0 : index
    %c0_83 = arith.constant 0 : index
    %139 = vector.load %arg4[%c5_81, %c0_82, %c0_83] : memref<9x4x4xf32, #tpu.memory_space<vmem>>, vector<1x4x4xf32>
    %140 = vector.shape_cast %139 : vector<1x4x4xf32> to vector<4x4xf32>
    %cst_84 = arith.constant dense<0.000000e+00> : vector<4x256xf32>
    %141 = tpu.matmul %140, %113, %cst_84 {dimension_numbers = #tpu.dot_dimension_numbers<[1], [0], [0], [1], [0, 0, 1, 1], [], []>} : vector<4x4xf32>, vector<4x256xf32>, vector<4x256xf32> -> vector<4x256xf32>
    %142 = arith.addf %138, %141 : vector<4x256xf32>
    %c6_85 = arith.constant 6 : index
    %c0_86 = arith.constant 0 : index
    %c0_87 = arith.constant 0 : index
    %143 = vector.load %arg4[%c6_85, %c0_86, %c0_87] : memref<9x4x4xf32, #tpu.memory_space<vmem>>, vector<1x4x4xf32>
    %144 = vector.shape_cast %143 : vector<1x4x4xf32> to vector<4x4xf32>
    %cst_88 = arith.constant dense<0.000000e+00> : vector<4x256xf32>
    %145 = tpu.matmul %144, %116, %cst_88 {dimension_numbers = #tpu.dot_dimension_numbers<[1], [0], [0], [1], [0, 0, 1, 1], [], []>} : vector<4x4xf32>, vector<4x256xf32>, vector<4x256xf32> -> vector<4x256xf32>
    %146 = arith.addf %142, %145 : vector<4x256xf32>
    %c7_89 = arith.constant 7 : index
    %c0_90 = arith.constant 0 : index
    %c0_91 = arith.constant 0 : index
    %147 = vector.load %arg4[%c7_89, %c0_90, %c0_91] : memref<9x4x4xf32, #tpu.memory_space<vmem>>, vector<1x4x4xf32>
    %148 = vector.shape_cast %147 : vector<1x4x4xf32> to vector<4x4xf32>
    %cst_92 = arith.constant dense<0.000000e+00> : vector<4x256xf32>
    %149 = tpu.matmul %148, %105, %cst_92 {dimension_numbers = #tpu.dot_dimension_numbers<[1], [0], [0], [1], [0, 0, 1, 1], [], []>} : vector<4x4xf32>, vector<4x256xf32>, vector<4x256xf32> -> vector<4x256xf32>
    %150 = arith.addf %146, %149 : vector<4x256xf32>
    %c8_93 = arith.constant 8 : index
    %c0_94 = arith.constant 0 : index
    %c0_95 = arith.constant 0 : index
    %151 = vector.load %arg4[%c8_93, %c0_94, %c0_95] : memref<9x4x4xf32, #tpu.memory_space<vmem>>, vector<1x4x4xf32>
    %152 = vector.shape_cast %151 : vector<1x4x4xf32> to vector<4x4xf32>
    %cst_96 = arith.constant dense<0.000000e+00> : vector<4x256xf32>
    %153 = tpu.matmul %152, %117, %cst_96 {dimension_numbers = #tpu.dot_dimension_numbers<[1], [0], [0], [1], [0, 0, 1, 1], [], []>} : vector<4x4xf32>, vector<4x256xf32>, vector<4x256xf32> -> vector<4x256xf32>
    %154 = arith.addf %150, %153 : vector<4x256xf32>
    %155 = vector.broadcast %3 : vector<4x1xf32> to vector<4x256xf32>
    %156 = arith.addf %154, %155 : vector<4x256xf32>
    %cst_97 = arith.constant dense<0.000000e+00> : vector<4xf32>
    %157 = vector.multi_reduction <add>, %156, %cst_97 [1] : vector<4x256xf32> to vector<4xf32>
    %158 = vector.shape_cast %157 : vector<4xf32> to vector<4x1xf32>
    %cst_98 = arith.constant 2.560000e+02 : f32
    %159 = vector.broadcast %cst_98 : f32 to vector<4x1xf32>
    %160 = arith.divf %158, %159 : vector<4x1xf32>
    %161 = vector.broadcast %160 : vector<4x1xf32> to vector<4x256xf32>
    %162 = arith.subf %156, %161 : vector<4x256xf32>
    %163 = arith.mulf %162, %162 : vector<4x256xf32>
    %cst_99 = arith.constant dense<0.000000e+00> : vector<4xf32>
    %164 = vector.multi_reduction <add>, %163, %cst_99 [1] : vector<4x256xf32> to vector<4xf32>
    %165 = vector.shape_cast %164 : vector<4xf32> to vector<4x1xf32>
    %cst_100 = arith.constant 2.560000e+02 : f32
    %166 = vector.broadcast %cst_100 : f32 to vector<4x1xf32>
    %167 = arith.divf %165, %166 : vector<4x1xf32>
    %cst_101 = arith.constant 9.99999974E-6 : f32
    %168 = vector.broadcast %cst_101 : f32 to vector<4x1xf32>
    %169 = arith.addf %167, %168 : vector<4x1xf32>
    %170 = math.rsqrt %169 : vector<4x1xf32>
    %171 = vector.broadcast %170 : vector<4x1xf32> to vector<4x256xf32>
    %172 = arith.mulf %162, %171 : vector<4x256xf32>
    %173 = arith.addf %1, %172 : vector<4x256xf32>
    %cst_102 = arith.constant 0.000000e+00 : f32
    %174 = vector.broadcast %cst_102 : f32 to vector<4x256xf32>
    %175 = arith.maximumf %173, %174 : vector<4x256xf32>
    %c0_103 = arith.constant 0 : index
    %c0_104 = arith.constant 0 : index
    %c0_105 = arith.constant 0 : index
    %176 = vector.load %arg6[%c0_103, %c0_104, %c0_105] : memref<1x4x256xf32, #tpu.memory_space<vmem>>, vector<1x4x256xf32>
    %177 = vector.shape_cast %176 : vector<1x4x256xf32> to vector<4x256xf32>
    %178 = vector.shape_cast %175 : vector<4x256xf32> to vector<1x4x256xf32>
    tpu.vector_store %arg6[%c0_103, %c0_104, %c0_105], %178 {strides = array<i32>} : memref<1x4x256xf32, #tpu.memory_space<vmem>>, vector<1x4x256xf32>,
    return
  }
  func.func @transform_0(%arg0: i32) -> (i32, i32, i32) {
    %c0_i32 = arith.constant 0 : i32
    %c0_i32_0 = arith.constant 0 : i32
    %c0_i32_1 = arith.constant 0 : i32
    return %arg0, %c0_i32, %c0_i32_0 : i32, i32, i32
  }
  func.func @transform_1(%arg0: i32) -> (i32, i32, i32) {
    %c0_i32 = arith.constant 0 : i32
    %c0_i32_0 = arith.constant 0 : i32
    %c0_i32_1 = arith.constant 0 : i32
    %c0_i32_2 = arith.constant 0 : i32
    return %c0_i32, %c0_i32_0, %c0_i32_1 : i32, i32, i32
  }
  func.func @transform_2(%arg0: i32) -> (i32, i32) {
    %c0_i32 = arith.constant 0 : i32
    %c0_i32_0 = arith.constant 0 : i32
    %c0_i32_1 = arith.constant 0 : i32
    return %c0_i32, %c0_i32_0 : i32, i32
  }
  func.func @transform_3(%arg0: i32) -> (i32, i32, i32) {
    %c0_i32 = arith.constant 0 : i32
    %c0_i32_0 = arith.constant 0 : i32
    %c0_i32_1 = arith.constant 0 : i32
    %c0_i32_2 = arith.constant 0 : i32
    return %c0_i32, %c0_i32_0, %c0_i32_1 : i32, i32, i32
  }
  func.func @transform_4(%arg0: i32) -> (i32, i32) {
    %c0_i32 = arith.constant 0 : i32
    %c0_i32_0 = arith.constant 0 : i32
    %c0_i32_1 = arith.constant 0 : i32
    return %c0_i32, %c0_i32_0 : i32, i32
  }
  func.func @transform_5(%arg0: i32) -> (i32, i32, i32) {
    %c0_i32 = arith.constant 0 : i32
    %c0_i32_0 = arith.constant 0 : i32
    %c0_i32_1 = arith.constant 0 : i32
    return %arg0, %c0_i32, %c0_i32_0 : i32, i32, i32
  }
}

</mosaic_0001>

<llo_original>
// kernel: resblock_forward.1
$region0: #{resblock_forward.1}
  #allocation0 [shape = 'u32[]', space=smem, size = 0x4, offset = 0x4, fixed_abs, tag = 'smem constant byte address 0x4 - core index']
  #allocation1 [shape = 'u32[144,128]{1,0:T(1,128)}', space=vmem, size = 0x12000, scoped, tag = 'internal scratch']
  %s0 = inlined_call_operand.vmem [shape: f32[2,4,256], index: 0, kind: input, shape index: {}]
  %s1 = inlined_call_operand.vmem [shape: f32[9,4,4], index: 1, kind: input, shape index: {}]
  %s2 = inlined_call_operand.vmem [shape: f32[4,1], index: 2, kind: input, shape index: {}]
  %s3 = inlined_call_operand.vmem [shape: f32[9,4,4], index: 3, kind: input, shape index: {}]
  %s4 = inlined_call_operand.vmem [shape: f32[4,1], index: 4, kind: input, shape index: {}]
  %s5 = inlined_call_operand.vmem [shape: f32[2,4,256], index: 5, kind: output, shape index: {}]
  %s6 = sld [smem:[#allocation0]]
  $region53: #{resblock_forward.1} parent=0
    _
  %s8 = ssub.s32 1, %s6
  %s9 = scalar_select 0, %s8, %s6
  loop: start=0, step=1, limit=4
  $region2: #{resblock_forward.1} parent=0 // loop_pre_header
    _
  $region3: #{resblock_forward.1} parent=0 // loop_header
    %s11 = sphi 0, %s15
    %p12 = scmp.ge.s32.totalorder %s11, 4
    %s21 = sphi 0, %s23
    %s24 = sphi 0, %s21
    %s25 = sphi 0, %s24
    %s41 = sphi 0, %s25
    %s45 = sphi 0, %s45
    %s47 = sphi 0, %s45
    %s48 = sphi 0, %s47
    %s62 = sphi 0, %s48
    %s66 = sphi 0, %s66
    %s68 = sphi 0, %s66
    %s69 = sphi 0, %s68
    %s83 = sphi 0, %s69
    %s87 = sphi 0, %s87
    %s89 = sphi 0, %s87
    %s90 = sphi 0, %s89
    %s104 = sphi 0, %s90
    %s108 = sphi 0, %s108
    %s110 = sphi 0, %s108
    %s111 = sphi 0, %s110
    %s125 = sphi 0, %s111
    %s131 = sphi 0, %s133
    %s134 = sphi 0, %s131
    %s135 = sphi 0, %s134
    %s151 = sphi 0, %s135
  $region4: #{resblock_forward.1} parent=0 // loop_header_branch
    %14 = sbr.rel (%p12) target = $region8
  $region5: #{resblock_forward.1} parent=0 // loop_body
    %s16 = ssub.s32 %s11, 1
    %s17 = ssub.s32 %s11, 2
    %s18 = sadd.s32 %s11, 1
    %s19 = ssub.s32 %s11, %s18
    %p20 = scmp.eq.s32.totalorder %s19, 0
    %s22 = sadd.s32 %s21, 1
    %s23 = scalar_select %p20, %s21, %s22
    %p26 = pneg %p20
    %p27 = scmp.eq.s32.totalorder %s11, 1
    %p28 = por %p26, %p27
    %p29 = scmp.ne.s32.totalorder %s21, %s24
    %p30 = scmp.eq.s32.totalorder %s11, 0
    %p31 = por %p29, %p30
    %p32 = scmp.ne.s32.totalorder %s21, %s24
    %p33 = scmp.eq.s32.totalorder %s16, 1
    %p34 = por %p32, %p33
    %p35 = scmp.ne.s32.totalorder %s24, %s25
    %p36 = scmp.eq.s32.totalorder %s16, 0
    %p37 = por %p35, %p36
    %p38 = scmp.ne.s32.totalorder %s24, %s25
    %p39 = scmp.eq.s32.totalorder %s17, 1
    %p40 = por %p38, %p39
    %p42 = scmp.ne.s32.totalorder %s25, %s41
    %p43 = scmp.eq.s32.totalorder %s17, 0
    %p44 = por %p42, %p43
    %s46 = sadd.s32 %s45, 1
    %p49 = scmp.eq.s32.totalorder %s11, 1
    %p50 = scmp.ne.s32.totalorder %s45, %s47
    %p51 = scmp.eq.s32.totalorder %s11, 0
    %p52 = por %p50, %p51
    %p53 = scmp.ne.s32.totalorder %s45, %s47
    %p54 = scmp.eq.s32.totalorder %s16, 1
    %p55 = por %p53, %p54
    %p56 = scmp.ne.s32.totalorder %s47, %s48
    %p57 = scmp.eq.s32.totalorder %s16, 0
    %p58 = por %p56, %p57
    %p59 = scmp.ne.s32.totalorder %s47, %s48
    %p60 = scmp.eq.s32.totalorder %s17, 1
    %p61 = por %p59, %p60
    %p63 = scmp.ne.s32.totalorder %s48, %s62
    %p64 = scmp.eq.s32.totalorder %s17, 0
    %p65 = por %p63, %p64
    %s67 = sadd.s32 %s66, 1
    %p70 = scmp.eq.s32.totalorder %s11, 1
    %p71 = scmp.ne.s32.totalorder %s66, %s68
    %p72 = scmp.eq.s32.totalorder %s11, 0
    %p73 = por %p71, %p72
    %p74 = scmp.ne.s32.totalorder %s66, %s68
    %p75 = scmp.eq.s32.totalorder %s16, 1
    %p76 = por %p74, %p75
    %p77 = scmp.ne.s32.totalorder %s68, %s69
    %p78 = scmp.eq.s32.totalorder %s16, 0
    %p79 = por %p77, %p78
    %p80 = scmp.ne.s32.totalorder %s68, %s69
    %p81 = scmp.eq.s32.totalorder %s17, 1
    %p82 = por %p80, %p81
    %p84 = scmp.ne.s32.totalorder %s69, %s83
    %p85 = scmp.eq.s32.totalorder %s17, 0
    %p86 = por %p84, %p85
    %s88 = sadd.s32 %s87, 1
    %p91 = scmp.eq.s32.totalorder %s11, 1
    %p92 = scmp.ne.s32.totalorder %s87, %s89
    %p93 = scmp.eq.s32.totalorder %s11, 0
    %p94 = por %p92, %p93
    %p95 = scmp.ne.s32.totalorder %s87, %s89
    %p96 = scmp.eq.s32.totalorder %s16, 1
    %p97 = por %p95, %p96
    %p98 = scmp.ne.s32.totalorder %s89, %s90
    %p99 = scmp.eq.s32.totalorder %s16, 0
    %p100 = por %p98, %p99
    %p101 = scmp.ne.s32.totalorder %s89, %s90
    %p102 = scmp.eq.s32.totalorder %s17, 1
    %p103 = por %p101, %p102
    %p105 = scmp.ne.s32.totalorder %s90, %s104
    %p106 = scmp.eq.s32.totalorder %s17, 0
    %p107 = por %p105, %p106
    %s109 = sadd.s32 %s108, 1
    %p112 = scmp.eq.s32.totalorder %s11, 1
    %p113 = scmp.ne.s32.totalorder %s108, %s110
    %p114 = scmp.eq.s32.totalorder %s11, 0
    %p115 = por %p113, %p114
    %p116 = scmp.ne.s32.totalorder %s108, %s110
    %p117 = scmp.eq.s32.totalorder %s16, 1
    %p118 = por %p116, %p117
    %p119 = scmp.ne.s32.totalorder %s110, %s111
    %p120 = scmp.eq.s32.totalorder %s16, 0
    %p121 = por %p119, %p120
    %p122 = scmp.ne.s32.totalorder %s110, %s111
    %p123 = scmp.eq.s32.totalorder %s17, 1
    %p124 = por %p122, %p123
    %p126 = scmp.ne.s32.totalorder %s111, %s125
    %p127 = scmp.eq.s32.totalorder %s17, 0
    %p128 = por %p126, %p127
    %s129 = ssub.s32 %s11, %s18
    %p130 = scmp.eq.s32.totalorder %s129, 0
    %s132 = sadd.s32 %s131, 1
    %s133 = scalar_select %p130, %s131, %s132
    %p136 = pneg %p130
    %p137 = scmp.eq.s32.totalorder %s11, 1
    %p138 = por %p136, %p137
    %p139 = scmp.ne.s32.totalorder %s131, %s134
    %p140 = scmp.eq.s32.totalorder %s11, 0
    %p141 = por %p139, %p140
    %p142 = scmp.ne.s32.totalorder %s131, %s134
    %p143 = scmp.eq.s32.totalorder %s16, 1
    %p144 = por %p142, %p143
    %p145 = scmp.ne.s32.totalorder %s134, %s135
    %p146 = scmp.eq.s32.totalorder %s16, 0
    %p147 = por %p145, %p146
    %p148 = scmp.ne.s32.totalorder %s134, %s135
    %p149 = scmp.eq.s32.totalorder %s17, 1
    %p150 = por %p148, %p149
    %p152 = scmp.ne.s32.totalorder %s135, %s151
    %p153 = scmp.eq.s32.totalorder %s17, 0
    %p154 = por %p152, %p153
    %p155 = scmp.le.s32.totalorder 1, %s11
    %p156 = scmp.lt.s32.totalorder %s11, 3
    %p157 = pnand %p155, %p156
    %p158 = pneg %p157
    // Predicated region
    $region9: #{resblock_forward.1} parent=5 // pred_check
      _
    $region10: #{resblock_forward.1} parent=5 // pred_check_branch
      %160 = sbr.rel (%p157) target = $region12
    $region11: #{resblock_forward.1} parent=5 // pred_region
      %s161 = ssub.s32 %s11, 1
      // Predicated region
      $region13: #{resblock_forward.1} parent=11 // pred_check
        %p162 = pneg %p58
      $region14: #{resblock_forward.1} parent=11 // pred_check_branch
        %164 = sbr.rel (%p162) target = $region16
      $region15: #{resblock_forward.1} parent=11 // pred_region
        _
      $region16: #{resblock_forward.1} parent=11 // pred_fallthru
        _
      // Predicated region
      $region17: #{resblock_forward.1} parent=11 // pred_check
        %p165 = pneg %p79
      $region18: #{resblock_forward.1} parent=11 // pred_check_branch
        %167 = sbr.rel (%p165) target = $region20
      $region19: #{resblock_forward.1} parent=11 // pred_region
        _
      $region20: #{resblock_forward.1} parent=11 // pred_fallthru
        _
      // Predicated region
      $region21: #{resblock_forward.1} parent=11 // pred_check
        %p168 = pneg %p100
      $region22: #{resblock_forward.1} parent=11 // pred_check_branch
        %170 = sbr.rel (%p168) target = $region24
      $region23: #{resblock_forward.1} parent=11 // pred_region
        _
      $region24: #{resblock_forward.1} parent=11 // pred_fallthru
        _
      // Predicated region
      $region25: #{resblock_forward.1} parent=11 // pred_check
        %p171 = pneg %p121
      $region26: #{resblock_forward.1} parent=11 // pred_check_branch
        %173 = sbr.rel (%p171) target = $region28
      $region27: #{resblock_forward.1} parent=11 // pred_region
        _
      $region28: #{resblock_forward.1} parent=11 // pred_fallthru
        _
    $region12: #{resblock_forward.1} parent=5 // pred_fallthru
      _
    %p174 = scmp.lt.s32.totalorder %s11, 2
    // Predicated region
    $region29: #{resblock_forward.1} parent=5 // pred_check
      %p175 = pneg %p174
    $region30: #{resblock_forward.1} parent=5 // pred_check_branch
      %177 = sbr.rel (%p175) target = $region32
    $region31: #{resblock_forward.1} parent=5 // pred_region
      // Predicated region
      $region33: #{resblock_forward.1} parent=31 // pred_check
        %p178 = pneg %p31
      $region34: #{resblock_forward.1} parent=31 // pred_check_branch
        %180 = sbr.rel (%p178) target = $region36
      $region35: #{resblock_forward.1} parent=31 // pred_region
        %p181 = scmp.lt.s32.totalorder %s11, 1
        %s182 = scalar_select %p181, %s11, 1
        %s183 = smul.addr %s182, 2
        %s184 = smul.addr %s183, 4
        %s185 = scalar_lea.vmem %s0, %s184
      $region36: #{resblock_forward.1} parent=31 // pred_fallthru
        _
    $region32: #{resblock_forward.1} parent=5 // pred_fallthru
      _
    %p186 = scmp.le.s32.totalorder 1, %s11
    %p187 = scmp.lt.s32.totalorder %s11, 3
    %p188 = pnand %p186, %p187
    %p189 = pneg %p188
    // Predicated region
    $region37: #{resblock_forward.1} parent=5 // pred_check
      _
    $region38: #{resblock_forward.1} parent=5 // pred_check_branch
      %191 = sbr.rel (%p188) target = $region40
    $region39: #{resblock_forward.1} parent=5 // pred_region
      %s192 = ssub.s32 %s11, 1
      %p193 = scmp.lt.s32.totalorder %s16, 1
      %s194 = scalar_select %p193, %s16, 1
      %s195 = smul.addr %s194, 2
      %s196 = smul.addr %s195, 4
      %s197 = scalar_lea.vmem %s0, %s196
      %p198 = pneg %p37
      %p199 = pneg %p34
      %p200 = pneg %p58
      %p201 = pneg %p55
      %p202 = pneg %p79
      %p203 = pneg %p76
      %p204 = pneg %p100
      %p205 = pneg %p97
      %p206 = pneg %p121
      %p207 = pneg %p118
      %p208 = pneg %p147
      %p209 = pneg %p144
      %p210 = scmp.lt.s32.totalorder %s16, 1
      %s211 = scalar_select %p210, %s16, 1
      %s212 = smul.addr %s211, 2
      %s213 = smul.addr %s212, 4
      %s214 = scalar_lea.vmem %s5, %s213
      %p215 = scmp.lt.s32.totalorder %s16, 1
      %s216 = scalar_select %p215, %s16, 1
      %s217 = smul.addr %s216, 2
      %s218 = smul.addr %s217, 4
      %s219 = scalar_lea.vmem %s0, %s218
      %p220 = scmp.lt.s32.totalorder %s16, 1
      %s221 = scalar_select %p220, %s16, 1
      %s222 = smul.addr %s221, 2
      %s223 = smul.addr %s222, 4
      %s224 = scalar_lea.vmem %s5, %s223
      %v225 = vld [vmem:[%s219] sm:$0xff]
      %v226 = vld [vmem:[%s2] sm:$0xf]
      %v227 = vld [vmem:[%s4] sm:$0xf]
      %v228 = vlaneseq
      %v229 = vand.u32 %v228, 127
      %v230 = vadd.s32 %v229, 128
      %vm231 = vcmp.lt.s32.totalorder %v229, 0
      %v232 = vsub.s32 0, %v229
      %v233 = vsel %vm231, %v232, %v229
      %v234 = vshrl.u32 %v233, 4
      %v235 = vand.u32 %v233, 15
      %v236 = vsub.s32 0, %v235
      %v237 = vsel %vm231, %v236, %v235
      %vm238 = vcmp.lt.s32.totalorder %v230, 0
      %v239 = vsub.s32 0, %v230
      %v240 = vsel %vm238, %v239, %v230
      %v241 = vshrl.u32 %v240, 4
      %v242 = vand.u32 %v240, 15
      %v243 = vsub.s32 0, %v242
      %v244 = vsel %vm238, %v243, %v242
      %vm245 = vcmp.ne.s32.totalorder %v237, 0
      %vm246 = vcmp.ne.s32.totalorder %v244, 0
      %vm247 = vcmp.lt.s32.totalorder %v237, 0
      %vm248 = vcmp.lt.s32.totalorder %v244, 0
      %vm249 = vmand %vm247, %vm245
      %vm250 = vmand %vm248, %vm246
      %v251 = vadd.s32 %v237, 16
      %v252 = vadd.s32 %v244, 16
      %v253 = vsel %vm249, %v251, %v237
      %v254 = vsel %vm250, %v252, %v244
      %vm255 = vcmp.eq.s32.totalorder %v253, 0
      %vm256 = vcmp.eq.s32.totalorder %v254, 0
      %vm257 = vcmp.eq.s32.totalorder %v253, 15
      %vm258 = vcmp.eq.s32.totalorder %v254, 15
      %vm259 = vcmp.lt.s32.totalorder %v229, 16
      %vm260 = vcmp.lt.s32.totalorder %v230, 16
      %vm261 = vcmp.ge.s32.totalorder %v229, 240
      %vm262 = vcmp.ge.s32.totalorder %v230, 240
      %v264 = vcombine.high %v225, %v225
      %266 = vrot.lane.b32.xlu0 %v225, 16
      %v267 = vpop.permute.xlu0 %266
      %268 = vrot.lane.b32.xlu0 %v264, 16
      %v269 = vpop.permute.xlu0 %268
      %v270 = vsel %vm259, %v267, %v269
      %v271 = vsel %vm259, %v269, %v267
      %272 = vrot.lane.b32.xlu0 %v225, 112
      %v273 = vpop.permute.xlu0 %272
      %274 = vrot.lane.b32.xlu0 %v264, 112
      %v275 = vpop.permute.xlu0 %274
      %vm276 = vcmp.lt.s32.totalorder %v229, 112
      %v277 = vsel %vm276, %v273, %v275
      %v278 = vsel %vm276, %v275, %v273
      %v279 = vsel %vm259, %v277, %v271
      %v280 = vsel %vm260, %v278, %v270
      %v281 = vsel %vm261, %v271, %v277
      %v282 = vsel %vm262, %v270, %v278
      %283 = vrot.lane.b32.xlu0 %v279, 1
      %v284 = vpop.permute.xlu0 %283
      %285 = vrot.lane.b32.xlu0 %v280, 1
      %v286 = vpop.permute.xlu0 %285
      %vm287 = vcmp.lt.s32.totalorder %v229, 1
      %v288 = vsel %vm287, %v284, %v286
      %v289 = vsel %vm287, %v286, %v284
      %290 = vrot.lane.b32.xlu0 %v279, 127
      %v291 = vpop.permute.xlu0 %290
      %292 = vrot.lane.b32.xlu0 %v280, 127
      %v293 = vpop.permute.xlu0 %292
      %vm294 = vcmp.lt.s32.totalorder %v229, 127
      %v295 = vsel %vm294, %v291, %v293
      %v296 = vsel %vm294, %v293, %v291
      %v297 = vsel %vm255, %v295, %v289
      %v298 = vsel %vm256, %v296, %v288
      %v299 = vsel %vm257, %v289, %v295
      %v300 = vsel %vm258, %v288, %v296
      %301 = vrot.lane.b32.xlu0 %v225, 1
      %v302 = vpop.permute.xlu0 %301
      %303 = vrot.lane.b32.xlu0 %v264, 1
      %v304 = vpop.permute.xlu0 %303
      %v305 = vsel %vm287, %v302, %v304
      %v306 = vsel %vm287, %v304, %v302
      %307 = vrot.lane.b32.xlu0 %v225, 127
      %v308 = vpop.permute.xlu0 %307
      %309 = vrot.lane.b32.xlu0 %v264, 127
      %v310 = vpop.permute.xlu0 %309
      %v311 = vsel %vm294, %v308, %v310
      %v312 = vsel %vm294, %v310, %v308
      %v313 = vsel %vm255, %v311, %v306
      %v314 = vsel %vm256, %v312, %v305
      %v315 = vsel %vm257, %v306, %v311
      %v316 = vsel %vm258, %v305, %v312
      %317 = vrot.lane.b32.xlu0 %v281, 1
      %v318 = vpop.permute.xlu0 %317
      %319 = vrot.lane.b32.xlu0 %v282, 1
      %v320 = vpop.permute.xlu0 %319
      %v321 = vsel %vm287, %v318, %v320
      %v322 = vsel %vm287, %v320, %v318
      %323 = vrot.lane.b32.xlu0 %v281, 127
      %v324 = vpop.permute.xlu0 %323
      %325 = vrot.lane.b32.xlu0 %v282, 127
      %v326 = vpop.permute.xlu0 %325
      %v327 = vsel %vm294, %v324, %v326
      %v328 = vsel %vm294, %v326, %v324
      %v329 = vsel %vm255, %v327, %v322
      %v330 = vsel %vm256, %v328, %v321
      %v331 = vsel %vm257, %v322, %v327
      %v332 = vsel %vm258, %v321, %v328
      %v333 = vld [vmem:[%s1] sm:$0xf]
      %s334 = scalar_lea.vmem %s1, 4
      %v335 = vld [vmem:[%s334] sm:$0xf]
      %vm336 = vcmask 31744
      %v338 = vsel %vm336, %v335, 0
      %vm340 = vcmask 1043456
      %v342 = vsel %vm340, %v279, 0
      %v345 = vsel %vm340, %v280, 0
      %347 = vmatprep.subr.mxu0 0.0
      %348 = vmatpush1.msra.mxu0 0.0
      %349 = vmatprep.subr.mxu0 0.0
      %350 = vmatpush1.msra.mxu0 0.0
      %351 = vmatprep.subr.mxu0 0.0
      %352 = vmatpush1.msra.mxu0 0.0
      %353 = vmatprep.subr.mxu0 0.0
      %354 = vmatpush1.msra.mxu0 0.0
      %355 = vmatprep.subr.mxu0 0.0
      %356 = vmatpush1.msra.mxu0 0.0
      %357 = vmatprep.subr.mxu0 0.0
      %358 = vmatpush1.msra.mxu0 0.0
      %359 = vmatprep.subr.mxu0 0.0
      %360 = vmatpush1.msra.mxu0 0.0
      %361 = vmatprep.subr.mxu0 0.0
      %362 = vmatpush1.msra.mxu0 0.0
      %363 = vmatprep.subr.mxu0 0.0
      %364 = vmatpush1.msra.mxu0 0.0
      %365 = vmatprep.subr.mxu0 0.0
      %366 = vmatpush1.msra.mxu0 0.0
      %367 = vmatprep.subr.mxu0 0.0
      %368 = vmatpush1.msra.mxu0 0.0
      %369 = vmatprep.subr.mxu0 0.0
      %370 = vmatpush1.msra.mxu0 0.0
      %371 = vmatprep.subr.mxu0 0.0
      %372 = vmatpush1.msra.mxu0 0.0
      %373 = vmatprep.subr.mxu0 0.0
      %374 = vmatpush1.msra.mxu0 0.0
      %375 = vmatprep.subr.mxu0 0.0
      %376 = vmatpush1.msra.mxu0 0.0
      %377 = vmatprep.subr.mxu0 %v345
      %378 = vmatpush1.msra.mxu0 %v342
      %379 = vmatprep.subr.mxu0 0.0
      %380 = vmatpush2.msra.mxu0 0.0
      %381 = vmatprep.subr.mxu0 0.0
      %382 = vmatpush2.msra.mxu0 0.0
      %383 = vmatprep.subr.mxu0 0.0
      %384 = vmatpush2.msra.mxu0 0.0
      %385 = vmatprep.subr.mxu0 0.0
      %386 = vmatpush2.msra.mxu0 0.0
      %387 = vmatprep.subr.mxu0 0.0
      %388 = vmatpush2.msra.mxu0 0.0
      %389 = vmatprep.subr.mxu0 0.0
      %390 = vmatpush2.msra.mxu0 0.0
      %391 = vmatprep.subr.mxu0 0.0
      %392 = vmatpush2.msra.mxu0 0.0
      %393 = vmatprep.subr.mxu0 0.0
      %394 = vmatpush2.msra.mxu0 0.0
      %395 = vmatprep.subr.mxu0 0.0
      %396 = vmatpush2.msra.mxu0 0.0
      %397 = vmatprep.subr.mxu0 0.0
      %398 = vmatpush2.msra.mxu0 0.0
      %399 = vmatprep.subr.mxu0 0.0
      %400 = vmatpush2.msra.mxu0 0.0
      %401 = vmatprep.subr.mxu0 0.0
      %402 = vmatpush2.msra.mxu0 0.0
      %403 = vmatprep.subr.mxu0 0.0
      %404 = vmatpush2.msra.mxu0 0.0
      %405 = vmatprep.subr.mxu0 0.0
      %406 = vmatpush2.msra.mxu0 0.0
      %407 = vmatprep.subr.mxu0 0.0
      %408 = vmatpush2.msra.mxu0 0.0
      %409 = vmatprep.subr.mxu0 0.0
      %410 = vmatpush2.msra.mxu0 0.0
      %411 = vmatprep.mubr.f32.mxu0 0.0
      %412 = vmatmul.mubr.f32.gmra.mxu0 %v338
      %v413 = vpop.f32.mrf.mxu0
      %v414 = vadd.f32 0.0, %v413
      %v415 = vpop.f32.mrf.mxu0
      %v416 = vadd.f32 0.0, %v415
      %417 = vdwg.mxu0
      %v419 = vsel %vm336, %v333, 0
      %v422 = vsel %vm340, %v297, 0
      %v425 = vsel %vm340, %v298, 0
      %427 = vmatprep.subr.mxu0 0.0
      %428 = vmatpush1.msra.mxu0 0.0
      %429 = vmatprep.subr.mxu0 0.0
      %430 = vmatpush1.msra.mxu0 0.0
      %431 = vmatprep.subr.mxu0 0.0
      %432 = vmatpush1.msra.mxu0 0.0
      %433 = vmatprep.subr.mxu0 0.0
      %434 = vmatpush1.msra.mxu0 0.0
      %435 = vmatprep.subr.mxu0 0.0
      %436 = vmatpush1.msra.mxu0 0.0
      %437 = vmatprep.subr.mxu0 0.0
      %438 = vmatpush1.msra.mxu0 0.0
      %439 = vmatprep.subr.mxu0 0.0
      %440 = vmatpush1.msra.mxu0 0.0
      %441 = vmatprep.subr.mxu0 0.0
      %442 = vmatpush1.msra.mxu0 0.0
      %443 = vmatprep.subr.mxu0 0.0
      %444 = vmatpush1.msra.mxu0 0.0
      %445 = vmatprep.subr.mxu0 0.0
      %446 = vmatpush1.msra.mxu0 0.0
      %447 = vmatprep.subr.mxu0 0.0
      %448 = vmatpush1.msra.mxu0 0.0
      %449 = vmatprep.subr.mxu0 0.0
      %450 = vmatpush1.msra.mxu0 0.0
      %451 = vmatprep.subr.mxu0 0.0
      %452 = vmatpush1.msra.mxu0 0.0
      %453 = vmatprep.subr.mxu0 0.0
      %454 = vmatpush1.msra.mxu0 0.0
      %455 = vmatprep.subr.mxu0 0.0
      %456 = vmatpush1.msra.mxu0 0.0
      %457 = vmatprep.subr.mxu0 %v425
      %458 = vmatpush1.msra.mxu0 %v422
      %459 = vmatprep.subr.mxu0 0.0
      %460 = vmatpush2.msra.mxu0 0.0
      %461 = vmatprep.subr.mxu0 0.0
      %462 = vmatpush2.msra.mxu0 0.0
      %463 = vmatprep.subr.mxu0 0.0
      %464 = vmatpush2.msra.mxu0 0.0
      %465 = vmatprep.subr.mxu0 0.0
      %466 = vmatpush2.msra.mxu0 0.0
      %467 = vmatprep.subr.mxu0 0.0
      %468 = vmatpush2.msra.mxu0 0.0
      %469 = vmatprep.subr.mxu0 0.0
      %470 = vmatpush2.msra.mxu0 0.0
      %471 = vmatprep.subr.mxu0 0.0
      %472 = vmatpush2.msra.mxu0 0.0
      %473 = vmatprep.subr.mxu0 0.0
      %474 = vmatpush2.msra.mxu0 0.0
      %475 = vmatprep.subr.mxu0 0.0
      %476 = vmatpush2.msra.mxu0 0.0
      %477 = vmatprep.subr.mxu0 0.0
      %478 = vmatpush2.msra.mxu0 0.0
      %479 = vmatprep.subr.mxu0 0.0
      %480 = vmatpush2.msra.mxu0 0.0
      %481 = vmatprep.subr.mxu0 0.0
      %482 = vmatpush2.msra.mxu0 0.0
      %483 = vmatprep.subr.mxu0 0.0
      %484 = vmatpush2.msra.mxu0 0.0
      %485 = vmatprep.subr.mxu0 0.0
      %486 = vmatpush2.msra.mxu0 0.0
      %487 = vmatprep.subr.mxu0 0.0
      %488 = vmatpush2.msra.mxu0 0.0
      %489 = vmatprep.subr.mxu0 0.0
      %490 = vmatpush2.msra.mxu0 0.0
      %491 = vmatprep.mubr.f32.mxu0 0.0
      %492 = vmatmul.mubr.f32.gmra.mxu0 %v419
      %v493 = vpop.f32.mrf.mxu0
      %v494 = vadd.f32 %v414, %v493
      %v495 = vpop.f32.mrf.mxu0
      %v496 = vadd.f32 %v416, %v495
      %497 = vdwg.mxu0
      %s498 = scalar_lea.vmem %s1, 8
      %v499 = vld [vmem:[%s498] sm:$0xf]
      %v501 = vsel %vm336, %v499, 0
      %v504 = vsel %vm340, %v299, 0
      %v507 = vsel %vm340, %v300, 0
      %509 = vmatprep.subr.mxu0 0.0
      %510 = vmatpush1.msra.mxu0 0.0
      %511 = vmatprep.subr.mxu0 0.0
      %512 = vmatpush1.msra.mxu0 0.0
      %513 = vmatprep.subr.mxu0 0.0
      %514 = vmatpush1.msra.mxu0 0.0
      %515 = vmatprep.subr.mxu0 0.0
      %516 = vmatpush1.msra.mxu0 0.0
      %517 = vmatprep.subr.mxu0 0.0
      %518 = vmatpush1.msra.mxu0 0.0
      %519 = vmatprep.subr.mxu0 0.0
      %520 = vmatpush1.msra.mxu0 0.0
      %521 = vmatprep.subr.mxu0 0.0
      %522 = vmatpush1.msra.mxu0 0.0
      %523 = vmatprep.subr.mxu0 0.0
      %524 = vmatpush1.msra.mxu0 0.0
      %525 = vmatprep.subr.mxu0 0.0
      %526 = vmatpush1.msra.mxu0 0.0
      %527 = vmatprep.subr.mxu0 0.0
      %528 = vmatpush1.msra.mxu0 0.0
      %529 = vmatprep.subr.mxu0 0.0
      %530 = vmatpush1.msra.mxu0 0.0
      %531 = vmatprep.subr.mxu0 0.0
      %532 = vmatpush1.msra.mxu0 0.0
      %533 = vmatprep.subr.mxu0 0.0
      %534 = vmatpush1.msra.mxu0 0.0
      %535 = vmatprep.subr.mxu0 0.0
      %536 = vmatpush1.msra.mxu0 0.0
      %537 = vmatprep.subr.mxu0 0.0
      %538 = vmatpush1.msra.mxu0 0.0
      %539 = vmatprep.subr.mxu0 %v507
      %540 = vmatpush1.msra.mxu0 %v504
      %541 = vmatprep.subr.mxu0 0.0
      %542 = vmatpush2.msra.mxu0 0.0
      %543 = vmatprep.subr.mxu0 0.0
      %544 = vmatpush2.msra.mxu0 0.0
      %545 = vmatprep.subr.mxu0 0.0
      %546 = vmatpush2.msra.mxu0 0.0
      %547 = vmatprep.subr.mxu0 0.0
      %548 = vmatpush2.msra.mxu0 0.0
      %549 = vmatprep.subr.mxu0 0.0
      %550 = vmatpush2.msra.mxu0 0.0
      %551 = vmatprep.subr.mxu0 0.0
      %552 = vmatpush2.msra.mxu0 0.0
      %553 = vmatprep.subr.mxu0 0.0
      %554 = vmatpush2.msra.mxu0 0.0
      %555 = vmatprep.subr.mxu0 0.0
      %556 = vmatpush2.msra.mxu0 0.0
      %557 = vmatprep.subr.mxu0 0.0
      %558 = vmatpush2.msra.mxu0 0.0
      %559 = vmatprep.subr.mxu0 0.0
      %560 = vmatpush2.msra.mxu0 0.0
      %561 = vmatprep.subr.mxu0 0.0
      %562 = vmatpush2.msra.mxu0 0.0
      %563 = vmatprep.subr.mxu0 0.0
      %564 = vmatpush2.msra.mxu0 0.0
      %565 = vmatprep.subr.mxu0 0.0
      %566 = vmatpush2.msra.mxu0 0.0
      %567 = vmatprep.subr.mxu0 0.0
      %568 = vmatpush2.msra.mxu0 0.0
      %569 = vmatprep.subr.mxu0 0.0
      %570 = vmatpush2.msra.mxu0 0.0
      %571 = vmatprep.subr.mxu0 0.0
      %572 = vmatpush2.msra.mxu0 0.0
      %573 = vmatprep.mubr.f32.mxu0 0.0
      %574 = vmatmul.mubr.f32.gmra.mxu0 %v501
      %v575 = vpop.f32.mrf.mxu0
      %v576 = vadd.f32 0.0, %v575
      %v577 = vpop.f32.mrf.mxu0
      %v578 = vadd.f32 0.0, %v577
      %579 = vdwg.mxu0
      %v580 = vadd.f32 %v494, %v576
      %v581 = vadd.f32 %v496, %v578
      %s582 = scalar_lea.vmem %s1, 12
      %v583 = vld [vmem:[%s582] sm:$0xf]
      %v585 = vsel %vm336, %v583, 0
      %v588 = vsel %vm340, %v313, 0
      %v591 = vsel %vm340, %v314, 0
      %593 = vmatprep.subr.mxu0 0.0
      %594 = vmatpush1.msra.mxu0 0.0
      %595 = vmatprep.subr.mxu0 0.0
      %596 = vmatpush1.msra.mxu0 0.0
      %597 = vmatprep.subr.mxu0 0.0
      %598 = vmatpush1.msra.mxu0 0.0
      %599 = vmatprep.subr.mxu0 0.0
      %600 = vmatpush1.msra.mxu0 0.0
      %601 = vmatprep.subr.mxu0 0.0
      %602 = vmatpush1.msra.mxu0 0.0
      %603 = vmatprep.subr.mxu0 0.0
      %604 = vmatpush1.msra.mxu0 0.0
      %605 = vmatprep.subr.mxu0 0.0
      %606 = vmatpush1.msra.mxu0 0.0
      %607 = vmatprep.subr.mxu0 0.0
      %608 = vmatpush1.msra.mxu0 0.0
      %609 = vmatprep.subr.mxu0 0.0
      %610 = vmatpush1.msra.mxu0 0.0
      %611 = vmatprep.subr.mxu0 0.0
      %612 = vmatpush1.msra.mxu0 0.0
      %613 = vmatprep.subr.mxu0 0.0
      %614 = vmatpush1.msra.mxu0 0.0
      %615 = vmatprep.subr.mxu0 0.0
      %616 = vmatpush1.msra.mxu0 0.0
      %617 = vmatprep.subr.mxu0 0.0
      %618 = vmatpush1.msra.mxu0 0.0
      %619 = vmatprep.subr.mxu0 0.0
      %620 = vmatpush1.msra.mxu0 0.0
      %621 = vmatprep.subr.mxu0 0.0
      %622 = vmatpush1.msra.mxu0 0.0
      %623 = vmatprep.subr.mxu0 %v591
      %624 = vmatpush1.msra.mxu0 %v588
      %625 = vmatprep.subr.mxu0 0.0
      %626 = vmatpush2.msra.mxu0 0.0
      %627 = vmatprep.subr.mxu0 0.0
      %628 = vmatpush2.msra.mxu0 0.0
      %629 = vmatprep.subr.mxu0 0.0
      %630 = vmatpush2.msra.mxu0 0.0
      %631 = vmatprep.subr.mxu0 0.0
      %632 = vmatpush2.msra.mxu0 0.0
      %633 = vmatprep.subr.mxu0 0.0
      %634 = vmatpush2.msra.mxu0 0.0
      %635 = vmatprep.subr.mxu0 0.0
      %636 = vmatpush2.msra.mxu0 0.0
      %637 = vmatprep.subr.mxu0 0.0
      %638 = vmatpush2.msra.mxu0 0.0
      %639 = vmatprep.subr.mxu0 0.0
      %640 = vmatpush2.msra.mxu0 0.0
      %641 = vmatprep.subr.mxu0 0.0
      %642 = vmatpush2.msra.mxu0 0.0
      %643 = vmatprep.subr.mxu0 0.0
      %644 = vmatpush2.msra.mxu0 0.0
      %645 = vmatprep.subr.mxu0 0.0
      %646 = vmatpush2.msra.mxu0 0.0
      %647 = vmatprep.subr.mxu0 0.0
      %648 = vmatpush2.msra.mxu0 0.0
      %649 = vmatprep.subr.mxu0 0.0
      %650 = vmatpush2.msra.mxu0 0.0
      %651 = vmatprep.subr.mxu0 0.0
      %652 = vmatpush2.msra.mxu0 0.0
      %653 = vmatprep.subr.mxu0 0.0
      %654 = vmatpush2.msra.mxu0 0.0
      %655 = vmatprep.subr.mxu0 0.0
      %656 = vmatpush2.msra.mxu0 0.0
      %657 = vmatprep.mubr.f32.mxu0 0.0
      %658 = vmatmul.mubr.f32.gmra.mxu0 %v585
      %v659 = vpop.f32.mrf.mxu0
      %v660 = vadd.f32 0.0, %v659
      %v661 = vpop.f32.mrf.mxu0
      %v662 = vadd.f32 0.0, %v661
      %663 = vdwg.mxu0
      %v664 = vadd.f32 %v580, %v660
      %v665 = vadd.f32 %v581, %v662
      %s666 = scalar_lea.vmem %s1, 16
      %v667 = vld [vmem:[%s666] sm:$0xf]
      %v669 = vsel %vm336, %v667, 0
      %v671 = vsel %vm340, %v225, 0
      %v673 = vsel %vm340, %v264, 0
      %675 = vmatprep.subr.mxu0 0.0
      %676 = vmatpush1.msra.mxu0 0.0
      %677 = vmatprep.subr.mxu0 0.0
      %678 = vmatpush1.msra.mxu0 0.0
      %679 = vmatprep.subr.mxu0 0.0
      %680 = vmatpush1.msra.mxu0 0.0
      %681 = vmatprep.subr.mxu0 0.0
      %682 = vmatpush1.msra.mxu0 0.0
      %683 = vmatprep.subr.mxu0 0.0
      %684 = vmatpush1.msra.mxu0 0.0
      %685 = vmatprep.subr.mxu0 0.0
      %686 = vmatpush1.msra.mxu0 0.0
      %687 = vmatprep.subr.mxu0 0.0
      %688 = vmatpush1.msra.mxu0 0.0
      %689 = vmatprep.subr.mxu0 0.0
      %690 = vmatpush1.msra.mxu0 0.0
      %691 = vmatprep.subr.mxu0 0.0
      %692 = vmatpush1.msra.mxu0 0.0
      %693 = vmatprep.subr.mxu0 0.0
      %694 = vmatpush1.msra.mxu0 0.0
      %695 = vmatprep.subr.mxu0 0.0
      %696 = vmatpush1.msra.mxu0 0.0
      %697 = vmatprep.subr.mxu0 0.0
      %698 = vmatpush1.msra.mxu0 0.0
      %699 = vmatprep.subr.mxu0 0.0
      %700 = vmatpush1.msra.mxu0 0.0
      %701 = vmatprep.subr.mxu0 0.0
      %702 = vmatpush1.msra.mxu0 0.0
      %703 = vmatprep.subr.mxu0 0.0
      %704 = vmatpush1.msra.mxu0 0.0
      %705 = vmatprep.subr.mxu0 %v673
      %706 = vmatpush1.msra.mxu0 %v671
      %707 = vmatprep.subr.mxu0 0.0
      %708 = vmatpush2.msra.mxu0 0.0
      %709 = vmatprep.subr.mxu0 0.0
      %710 = vmatpush2.msra.mxu0 0.0
      %711 = vmatprep.subr.mxu0 0.0
      %712 = vmatpush2.msra.mxu0 0.0
      %713 = vmatprep.subr.mxu0 0.0
      %714 = vmatpush2.msra.mxu0 0.0
      %715 = vmatprep.subr.mxu0 0.0
      %716 = vmatpush2.msra.mxu0 0.0
      %717 = vmatprep.subr.mxu0 0.0
      %718 = vmatpush2.msra.mxu0 0.0
      %719 = vmatprep.subr.mxu0 0.0
      %720 = vmatpush2.msra.mxu0 0.0
      %721 = vmatprep.subr.mxu0 0.0
      %722 = vmatpush2.msra.mxu0 0.0
      %723 = vmatprep.subr.mxu0 0.0
      %724 = vmatpush2.msra.mxu0 0.0
      %725 = vmatprep.subr.mxu0 0.0
      %726 = vmatpush2.msra.mxu0 0.0
      %727 = vmatprep.subr.mxu0 0.0
      %728 = vmatpush2.msra.mxu0 0.0
      %729 = vmatprep.subr.mxu0 0.0
      %730 = vmatpush2.msra.mxu0 0.0
      %731 = vmatprep.subr.mxu0 0.0
      %732 = vmatpush2.msra.mxu0 0.0
      %733 = vmatprep.subr.mxu0 0.0
      %734 = vmatpush2.msra.mxu0 0.0
      %735 = vmatprep.subr.mxu0 0.0
      %736 = vmatpush2.msra.mxu0 0.0
      %737 = vmatprep.subr.mxu0 0.0
      %738 = vmatpush2.msra.mxu0 0.0
      %739 = vmatprep.mubr.f32.mxu0 0.0
      %740 = vmatmul.mubr.f32.gmra.mxu0 %v669
      %v741 = vpop.f32.mrf.mxu0
      %v742 = vadd.f32 0.0, %v741
      %v743 = vpop.f32.mrf.mxu0
      %v744 = vadd.f32 0.0, %v743
      %745 = vdwg.mxu0
      %v746 = vadd.f32 %v664, %v742
      %v747 = vadd.f32 %v665, %v744
      %s748 = scalar_lea.vmem %s1, 20
      %v749 = vld [vmem:[%s748] sm:$0xf]
      %v751 = vsel %vm336, %v749, 0
      %v754 = vsel %vm340, %v315, 0
      %v757 = vsel %vm340, %v316, 0
      %759 = vmatprep.subr.mxu0 0.0
      %760 = vmatpush1.msra.mxu0 0.0
      %761 = vmatprep.subr.mxu0 0.0
      %762 = vmatpush1.msra.mxu0 0.0
      %763 = vmatprep.subr.mxu0 0.0
      %764 = vmatpush1.msra.mxu0 0.0
      %765 = vmatprep.subr.mxu0 0.0
      %766 = vmatpush1.msra.mxu0 0.0
      %767 = vmatprep.subr.mxu0 0.0
      %768 = vmatpush1.msra.mxu0 0.0
      %769 = vmatprep.subr.mxu0 0.0
      %770 = vmatpush1.msra.mxu0 0.0
      %771 = vmatprep.subr.mxu0 0.0
      %772 = vmatpush1.msra.mxu0 0.0
      %773 = vmatprep.subr.mxu0 0.0
      %774 = vmatpush1.msra.mxu0 0.0
      %775 = vmatprep.subr.mxu0 0.0
      %776 = vmatpush1.msra.mxu0 0.0
      %777 = vmatprep.subr.mxu0 0.0
      %778 = vmatpush1.msra.mxu0 0.0
      %779 = vmatprep.subr.mxu0 0.0
      %780 = vmatpush1.msra.mxu0 0.0
      %781 = vmatprep.subr.mxu0 0.0
      %782 = vmatpush1.msra.mxu0 0.0
      %783 = vmatprep.subr.mxu0 0.0
      %784 = vmatpush1.msra.mxu0 0.0
      %785 = vmatprep.subr.mxu0 0.0
      %786 = vmatpush1.msra.mxu0 0.0
      %787 = vmatprep.subr.mxu0 0.0
      %788 = vmatpush1.msra.mxu0 0.0
      %789 = vmatprep.subr.mxu0 %v757
      %790 = vmatpush1.msra.mxu0 %v754
      %791 = vmatprep.subr.mxu0 0.0
      %792 = vmatpush2.msra.mxu0 0.0
      %793 = vmatprep.subr.mxu0 0.0
      %794 = vmatpush2.msra.mxu0 0.0
      %795 = vmatprep.subr.mxu0 0.0
      %796 = vmatpush2.msra.mxu0 0.0
      %797 = vmatprep.subr.mxu0 0.0
      %798 = vmatpush2.msra.mxu0 0.0
      %799 = vmatprep.subr.mxu0 0.0
      %800 = vmatpush2.msra.mxu0 0.0
      %801 = vmatprep.subr.mxu0 0.0
      %802 = vmatpush2.msra.mxu0 0.0
      %803 = vmatprep.subr.mxu0 0.0
      %804 = vmatpush2.msra.mxu0 0.0
      %805 = vmatprep.subr.mxu0 0.0
      %806 = vmatpush2.msra.mxu0 0.0
      %807 = vmatprep.subr.mxu0 0.0
      %808 = vmatpush2.msra.mxu0 0.0
      %809 = vmatprep.subr.mxu0 0.0
      %810 = vmatpush2.msra.mxu0 0.0
      %811 = vmatprep.subr.mxu0 0.0
      %812 = vmatpush2.msra.mxu0 0.0
      %813 = vmatprep.subr.mxu0 0.0
      %814 = vmatpush2.msra.mxu0 0.0
      %815 = vmatprep.subr.mxu0 0.0
      %816 = vmatpush2.msra.mxu0 0.0
      %817 = vmatprep.subr.mxu0 0.0
      %818 = vmatpush2.msra.mxu0 0.0
      %819 = vmatprep.subr.mxu0 0.0
      %820 = vmatpush2.msra.mxu0 0.0
      %821 = vmatprep.subr.mxu0 0.0
      %822 = vmatpush2.msra.mxu0 0.0
      %823 = vmatprep.mubr.f32.mxu0 0.0
      %824 = vmatmul.mubr.f32.gmra.mxu0 %v751
      %v825 = vpop.f32.mrf.mxu0
      %v826 = vadd.f32 0.0, %v825
      %v827 = vpop.f32.mrf.mxu0
      %v828 = vadd.f32 0.0, %v827
      %829 = vdwg.mxu0
      %v830 = vadd.f32 %v746, %v826
      %v831 = vadd.f32 %v747, %v828
      %s832 = scalar_lea.vmem %s1, 24
      %v833 = vld [vmem:[%s832] sm:$0xf]
      %v835 = vsel %vm336, %v833, 0
      %v838 = vsel %vm340, %v329, 0
      %v841 = vsel %vm340, %v330, 0
      %843 = vmatprep.subr.mxu0 0.0
      %844 = vmatpush1.msra.mxu0 0.0
      %845 = vmatprep.subr.mxu0 0.0
      %846 = vmatpush1.msra.mxu0 0.0
      %847 = vmatprep.subr.mxu0 0.0
      %848 = vmatpush1.msra.mxu0 0.0
      %849 = vmatprep.subr.mxu0 0.0
      %850 = vmatpush1.msra.mxu0 0.0
      %851 = vmatprep.subr.mxu0 0.0
      %852 = vmatpush1.msra.mxu0 0.0
      %853 = vmatprep.subr.mxu0 0.0
      %854 = vmatpush1.msra.mxu0 0.0
      %855 = vmatprep.subr.mxu0 0.0
      %856 = vmatpush1.msra.mxu0 0.0
      %857 = vmatprep.subr.mxu0 0.0
      %858 = vmatpush1.msra.mxu0 0.0
      %859 = vmatprep.subr.mxu0 0.0
      %860 = vmatpush1.msra.mxu0 0.0
      %861 = vmatprep.subr.mxu0 0.0
      %862 = vmatpush1.msra.mxu0 0.0
      %863 = vmatprep.subr.mxu0 0.0
      %864 = vmatpush1.msra.mxu0 0.0
      %865 = vmatprep.subr.mxu0 0.0
      %866 = vmatpush1.msra.mxu0 0.0
      %867 = vmatprep.subr.mxu0 0.0
      %868 = vmatpush1.msra.mxu0 0.0
      %869 = vmatprep.subr.mxu0 0.0
      %870 = vmatpush1.msra.mxu0 0.0
      %871 = vmatprep.subr.mxu0 0.0
      %872 = vmatpush1.msra.mxu0 0.0
      %873 = vmatprep.subr.mxu0 %v841
      %874 = vmatpush1.msra.mxu0 %v838
      %875 = vmatprep.subr.mxu0 0.0
      %876 = vmatpush2.msra.mxu0 0.0
      %877 = vmatprep.subr.mxu0 0.0
      %878 = vmatpush2.msra.mxu0 0.0
      %879 = vmatprep.subr.mxu0 0.0
      %880 = vmatpush2.msra.mxu0 0.0
      %881 = vmatprep.subr.mxu0 0.0
      %882 = vmatpush2.msra.mxu0 0.0
      %883 = vmatprep.subr.mxu0 0.0
      %884 = vmatpush2.msra.mxu0 0.0
      %885 = vmatprep.subr.mxu0 0.0
      %886 = vmatpush2.msra.mxu0 0.0
      %887 = vmatprep.subr.mxu0 0.0
      %888 = vmatpush2.msra.mxu0 0.0
      %889 = vmatprep.subr.mxu0 0.0
      %890 = vmatpush2.msra.mxu0 0.0
      %891 = vmatprep.subr.mxu0 0.0
      %892 = vmatpush2.msra.mxu0 0.0
      %893 = vmatprep.subr.mxu0 0.0
      %894 = vmatpush2.msra.mxu0 0.0
      %895 = vmatprep.subr.mxu0 0.0
      %896 = vmatpush2.msra.mxu0 0.0
      %897 = vmatprep.subr.mxu0 0.0
      %898 = vmatpush2.msra.mxu0 0.0
      %899 = vmatprep.subr.mxu0 0.0
      %900 = vmatpush2.msra.mxu0 0.0
      %901 = vmatprep.subr.mxu0 0.0
      %902 = vmatpush2.msra.mxu0 0.0
      %903 = vmatprep.subr.mxu0 0.0
      %904 = vmatpush2.msra.mxu0 0.0
      %905 = vmatprep.subr.mxu0 0.0
      %906 = vmatpush2.msra.mxu0 0.0
      %907 = vmatprep.mubr.f32.mxu0 0.0
      %908 = vmatmul.mubr.f32.gmra.mxu0 %v835
      %v909 = vpop.f32.mrf.mxu0
      %v910 = vadd.f32 0.0, %v909
      %v911 = vpop.f32.mrf.mxu0
      %v912 = vadd.f32 0.0, %v911
      %913 = vdwg.mxu0
      %v914 = vadd.f32 %v830, %v910
      %v915 = vadd.f32 %v831, %v912
      %s916 = scalar_lea.vmem %s1, 28
      %v917 = vld [vmem:[%s916] sm:$0xf]
      %v919 = vsel %vm336, %v917, 0
      %v922 = vsel %vm340, %v281, 0
      %v925 = vsel %vm340, %v282, 0
      %927 = vmatprep.subr.mxu0 0.0
      %928 = vmatpush1.msra.mxu0 0.0
      %929 = vmatprep.subr.mxu0 0.0
      %930 = vmatpush1.msra.mxu0 0.0
      %931 = vmatprep.subr.mxu0 0.0
      %932 = vmatpush1.msra.mxu0 0.0
      %933 = vmatprep.subr.mxu0 0.0
      %934 = vmatpush1.msra.mxu0 0.0
      %935 = vmatprep.subr.mxu0 0.0
      %936 = vmatpush1.msra.mxu0 0.0
      %937 = vmatprep.subr.mxu0 0.0
      %938 = vmatpush1.msra.mxu0 0.0
      %939 = vmatprep.subr.mxu0 0.0
      %940 = vmatpush1.msra.mxu0 0.0
      %941 = vmatprep.subr.mxu0 0.0
      %942 = vmatpush1.msra.mxu0 0.0
      %943 = vmatprep.subr.mxu0 0.0
      %944 = vmatpush1.msra.mxu0 0.0
      %945 = vmatprep.subr.mxu0 0.0
      %946 = vmatpush1.msra.mxu0 0.0
      %947 = vmatprep.subr.mxu0 0.0
      %948 = vmatpush1.msra.mxu0 0.0
      %949 = vmatprep.subr.mxu0 0.0
      %950 = vmatpush1.msra.mxu0 0.0
      %951 = vmatprep.subr.mxu0 0.0
      %952 = vmatpush1.msra.mxu0 0.0
      %953 = vmatprep.subr.mxu0 0.0
      %954 = vmatpush1.msra.mxu0 0.0
      %955 = vmatprep.subr.mxu0 0.0
      %956 = vmatpush1.msra.mxu0 0.0
      %957 = vmatprep.subr.mxu0 %v925
      %958 = vmatpush1.msra.mxu0 %v922
      %959 = vmatprep.subr.mxu0 0.0
      %960 = vmatpush2.msra.mxu0 0.0
      %961 = vmatprep.subr.mxu0 0.0
      %962 = vmatpush2.msra.mxu0 0.0
      %963 = vmatprep.subr.mxu0 0.0
      %964 = vmatpush2.msra.mxu0 0.0
      %965 = vmatprep.subr.mxu0 0.0
      %966 = vmatpush2.msra.mxu0 0.0
      %967 = vmatprep.subr.mxu0 0.0
      %968 = vmatpush2.msra.mxu0 0.0
      %969 = vmatprep.subr.mxu0 0.0
      %970 = vmatpush2.msra.mxu0 0.0
      %971 = vmatprep.subr.mxu0 0.0
      %972 = vmatpush2.msra.mxu0 0.0
      %973 = vmatprep.subr.mxu0 0.0
      %974 = vmatpush2.msra.mxu0 0.0
      %975 = vmatprep.subr.mxu0 0.0
      %976 = vmatpush2.msra.mxu0 0.0
      %977 = vmatprep.subr.mxu0 0.0
      %978 = vmatpush2.msra.mxu0 0.0
      %979 = vmatprep.subr.mxu0 0.0
      %980 = vmatpush2.msra.mxu0 0.0
      %981 = vmatprep.subr.mxu0 0.0
      %982 = vmatpush2.msra.mxu0 0.0
      %983 = vmatprep.subr.mxu0 0.0
      %984 = vmatpush2.msra.mxu0 0.0
      %985 = vmatprep.subr.mxu0 0.0
      %986 = vmatpush2.msra.mxu0 0.0
      %987 = vmatprep.subr.mxu0 0.0
      %988 = vmatpush2.msra.mxu0 0.0
      %989 = vmatprep.subr.mxu0 0.0
      %990 = vmatpush2.msra.mxu0 0.0
      %991 = vmatprep.mubr.f32.mxu0 0.0
      %992 = vmatmul.mubr.f32.gmra.mxu0 %v919
      %v993 = vpop.f32.mrf.mxu0
      %v994 = vadd.f32 0.0, %v993
      %v995 = vpop.f32.mrf.mxu0
      %v996 = vadd.f32 0.0, %v995
      %997 = vdwg.mxu0
      %v998 = vadd.f32 %v914, %v994
      %v999 = vadd.f32 %v915, %v996
      %s1000 = scalar_lea.vmem %s1, 32
      %v1001 = vld [vmem:[%s1000] sm:$0xf]
      %v1003 = vsel %vm336, %v1001, 0
      %v1006 = vsel %vm340, %v331, 0
      %v1009 = vsel %vm340, %v332, 0
      %1011 = vmatprep.subr.mxu0 0.0
      %1012 = vmatpush1.msra.mxu0 0.0
      %1013 = vmatprep.subr.mxu0 0.0
      %1014 = vmatpush1.msra.mxu0 0.0
      %1015 = vmatprep.subr.mxu0 0.0
      %1016 = vmatpush1.msra.mxu0 0.0
      %1017 = vmatprep.subr.mxu0 0.0
      %1018 = vmatpush1.msra.mxu0 0.0
      %1019 = vmatprep.subr.mxu0 0.0
      %1020 = vmatpush1.msra.mxu0 0.0
      %1021 = vmatprep.subr.mxu0 0.0
      %1022 = vmatpush1.msra.mxu0 0.0
      %1023 = vmatprep.subr.mxu0 0.0
      %1024 = vmatpush1.msra.mxu0 0.0
      %1025 = vmatprep.subr.mxu0 0.0
      %1026 = vmatpush1.msra.mxu0 0.0
      %1027 = vmatprep.subr.mxu0 0.0
      %1028 = vmatpush1.msra.mxu0 0.0
      %1029 = vmatprep.subr.mxu0 0.0
      %1030 = vmatpush1.msra.mxu0 0.0
      %1031 = vmatprep.subr.mxu0 0.0
      %1032 = vmatpush1.msra.mxu0 0.0
      %1033 = vmatprep.subr.mxu0 0.0
      %1034 = vmatpush1.msra.mxu0 0.0
      %1035 = vmatprep.subr.mxu0 0.0
      %1036 = vmatpush1.msra.mxu0 0.0
      %1037 = vmatprep.subr.mxu0 0.0
      %1038 = vmatpush1.msra.mxu0 0.0
      %1039 = vmatprep.subr.mxu0 0.0
      %1040 = vmatpush1.msra.mxu0 0.0
      %1041 = vmatprep.subr.mxu0 %v1009
      %1042 = vmatpush1.msra.mxu0 %v1006
      %1043 = vmatprep.subr.mxu0 0.0
      %1044 = vmatpush2.msra.mxu0 0.0
      %1045 = vmatprep.subr.mxu0 0.0
      %1046 = vmatpush2.msra.mxu0 0.0
      %1047 = vmatprep.subr.mxu0 0.0
      %1048 = vmatpush2.msra.mxu0 0.0
      %1049 = vmatprep.subr.mxu0 0.0
      %1050 = vmatpush2.msra.mxu0 0.0
      %1051 = vmatprep.subr.mxu0 0.0
      %1052 = vmatpush2.msra.mxu0 0.0
      %1053 = vmatprep.subr.mxu0 0.0
      %1054 = vmatpush2.msra.mxu0 0.0
      %1055 = vmatprep.subr.mxu0 0.0
      %1056 = vmatpush2.msra.mxu0 0.0
      %1057 = vmatprep.subr.mxu0 0.0
      %1058 = vmatpush2.msra.mxu0 0.0
      %1059 = vmatprep.subr.mxu0 0.0
      %1060 = vmatpush2.msra.mxu0 0.0
      %1061 = vmatprep.subr.mxu0 0.0
      %1062 = vmatpush2.msra.mxu0 0.0
      %1063 = vmatprep.subr.mxu0 0.0
      %1064 = vmatpush2.msra.mxu0 0.0
      %1065 = vmatprep.subr.mxu0 0.0
      %1066 = vmatpush2.msra.mxu0 0.0
      %1067 = vmatprep.subr.mxu0 0.0
      %1068 = vmatpush2.msra.mxu0 0.0
      %1069 = vmatprep.subr.mxu0 0.0
      %1070 = vmatpush2.msra.mxu0 0.0
      %1071 = vmatprep.subr.mxu0 0.0
      %1072 = vmatpush2.msra.mxu0 0.0
      %1073 = vmatprep.subr.mxu0 0.0
      %1074 = vmatpush2.msra.mxu0 0.0
      %1075 = vmatprep.mubr.f32.mxu0 0.0
      %1076 = vmatmul.mubr.f32.gmra.mxu0 %v1003
      %v1077 = vpop.f32.mrf.mxu0
      %v1078 = vadd.f32 0.0, %v1077
      %v1079 = vpop.f32.mrf.mxu0
      %v1080 = vadd.f32 0.0, %v1079
      %1081 = vdwg.mxu0
      %v1082 = vadd.f32 %v998, %v1078
      %v1083 = vadd.f32 %v999, %v1080
      %1085 = vset.pattern.permute.xlu0 0
      %1086 = vperm.xlu0 %1085, %v226
      %v1087 = vpop.permute.xlu0 %1086
      %v1089 = vadd.f32 %v1082, %v1087
      %v1090 = vadd.f32 %v1083, %v1087
      %v1091 = vsel %vm340, %v1089, 0.0
      %v1092 = vsel %vm340, %v1090, 0.0
      %v1093 = vadd.f32 %v1091, %v1092
      %1094 = vadd.xlane.f32.xlu0 %v1093
      %v1095 = vpop.xlane.xlu0 %1094
      %v1096 = vrcp.pop 256.0
      %v1097 = vmul.f32 %v1095, %v1096
      %v1098 = vsub.f32 %v1089, %v1097
      %v1099 = vsub.f32 %v1090, %v1097
      %v1100 = vmul.f32 %v1098, %v1098
      %v1101 = vmul.f32 %v1099, %v1099
      %v1102 = vsel %vm340, %v1100, 0.0
      %v1103 = vsel %vm340, %v1101, 0.0
      %v1104 = vadd.f32 %v1102, %v1103
      %1105 = vadd.xlane.f32.xlu0 %v1104
      %v1106 = vpop.xlane.xlu0 %1105
      %v1107 = vmul.f32 %v1106, %v1096
      %v1108 = vadd.f32 %v1107, 1e-05
      %v1109 = vrsqrt.pop %v1108
      %v1110 = vmul.f32 %v1098, %v1109
      %v1111 = vmul.f32 %v1099, %v1109
      %v1112 = vmax.f32 %v1110, 0.0
      %v1113 = vmax.f32 %v1111, 0.0
      %1114 = vrot.lane.b32.xlu0 %v1112, 16
      %v1115 = vpop.permute.xlu0 %1114
      %1116 = vrot.lane.b32.xlu0 %v1113, 16
      %v1117 = vpop.permute.xlu0 %1116
      %v1118 = vsel %vm259, %v1115, %v1117
      %v1119 = vsel %vm259, %v1117, %v1115
      %1120 = vrot.lane.b32.xlu0 %v1112, 112
      %v1121 = vpop.permute.xlu0 %1120
      %1122 = vrot.lane.b32.xlu0 %v1113, 112
      %v1123 = vpop.permute.xlu0 %1122
      %v1124 = vsel %vm276, %v1121, %v1123
      %v1125 = vsel %vm276, %v1123, %v1121
      %v1126 = vsel %vm259, %v1124, %v1119
      %v1127 = vsel %vm260, %v1125, %v1118
      %v1128 = vsel %vm261, %v1119, %v1124
      %v1129 = vsel %vm262, %v1118, %v1125
      %1130 = vrot.lane.b32.xlu0 %v1126, 1
      %v1131 = vpop.permute.xlu0 %1130
      %1132 = vrot.lane.b32.xlu0 %v1127, 1
      %v1133 = vpop.permute.xlu0 %1132
      %v1134 = vsel %vm287, %v1131, %v1133
      %v1135 = vsel %vm287, %v1133, %v1131
      %1136 = vrot.lane.b32.xlu0 %v1126, 127
      %v1137 = vpop.permute.xlu0 %1136
      %1138 = vrot.lane.b32.xlu0 %v1127, 127
      %v1139 = vpop.permute.xlu0 %1138
      %v1140 = vsel %vm294, %v1137, %v1139
      %v1141 = vsel %vm294, %v1139, %v1137
      %v1142 = vsel %vm255, %v1140, %v1135
      %v1143 = vsel %vm256, %v1141, %v1134
      %v1144 = vsel %vm257, %v1135, %v1140
      %v1145 = vsel %vm258, %v1134, %v1141
      %1146 = vrot.lane.b32.xlu0 %v1112, 1
      %v1147 = vpop.permute.xlu0 %1146
      %1148 = vrot.lane.b32.xlu0 %v1113, 1
      %v1149 = vpop.permute.xlu0 %1148
      %v1150 = vsel %vm287, %v1147, %v1149
      %v1151 = vsel %vm287, %v1149, %v1147
      %1152 = vrot.lane.b32.xlu0 %v1112, 127
      %v1153 = vpop.permute.xlu0 %1152
      %1154 = vrot.lane.b32.xlu0 %v1113, 127
      %v1155 = vpop.permute.xlu0 %1154
      %v1156 = vsel %vm294, %v1153, %v1155
      %v1157 = vsel %vm294, %v1155, %v1153
      %v1158 = vsel %vm255, %v1156, %v1151
      %v1159 = vsel %vm256, %v1157, %v1150
      %v1160 = vsel %vm257, %v1151, %v1156
      %v1161 = vsel %vm258, %v1150, %v1157
      %1162 = vrot.lane.b32.xlu0 %v1128, 1
      %v1163 = vpop.permute.xlu0 %1162
      %1164 = vrot.lane.b32.xlu0 %v1129, 1
      %v1165 = vpop.permute.xlu0 %1164
      %v1166 = vsel %vm287, %v1163, %v1165
      %v1167 = vsel %vm287, %v1165, %v1163
      %1168 = vrot.lane.b32.xlu0 %v1128, 127
      %v1169 = vpop.permute.xlu0 %1168
      %1170 = vrot.lane.b32.xlu0 %v1129, 127
      %v1171 = vpop.permute.xlu0 %1170
      %v1172 = vsel %vm294, %v1169, %v1171
      %v1173 = vsel %vm294, %v1171, %v1169
      %v1174 = vsel %vm255, %v1172, %v1167
      %v1175 = vsel %vm256, %v1173, %v1166
      %v1176 = vsel %vm257, %v1167, %v1172
      %v1177 = vsel %vm258, %v1166, %v1173
      %v1178 = vld [vmem:[%s3] sm:$0xf]
      %s1179 = scalar_lea.vmem %s3, 4
      %v1180 = vld [vmem:[%s1179] sm:$0xf]
      %v1182 = vsel %vm336, %v1180, 0
      %v1185 = vsel %vm340, %v1126, 0
      %v1188 = vsel %vm340, %v1127, 0
      %1190 = vmatprep.subr.mxu0 0.0
      %1191 = vmatpush1.msra.mxu0 0.0
      %1192 = vmatprep.subr.mxu0 0.0
      %1193 = vmatpush1.msra.mxu0 0.0
      %1194 = vmatprep.subr.mxu0 0.0
      %1195 = vmatpush1.msra.mxu0 0.0
      %1196 = vmatprep.subr.mxu0 0.0
      %1197 = vmatpush1.msra.mxu0 0.0
      %1198 = vmatprep.subr.mxu0 0.0
      %1199 = vmatpush1.msra.mxu0 0.0
      %1200 = vmatprep.subr.mxu0 0.0
      %1201 = vmatpush1.msra.mxu0 0.0
      %1202 = vmatprep.subr.mxu0 0.0
      %1203 = vmatpush1.msra.mxu0 0.0
      %1204 = vmatprep.subr.mxu0 0.0
      %1205 = vmatpush1.msra.mxu0 0.0
      %1206 = vmatprep.subr.mxu0 0.0
      %1207 = vmatpush1.msra.mxu0 0.0
      %1208 = vmatprep.subr.mxu0 0.0
      %1209 = vmatpush1.msra.mxu0 0.0
      %1210 = vmatprep.subr.mxu0 0.0
      %1211 = vmatpush1.msra.mxu0 0.0
      %1212 = vmatprep.subr.mxu0 0.0
      %1213 = vmatpush1.msra.mxu0 0.0
      %1214 = vmatprep.subr.mxu0 0.0
      %1215 = vmatpush1.msra.mxu0 0.0
      %1216 = vmatprep.subr.mxu0 0.0
      %1217 = vmatpush1.msra.mxu0 0.0
      %1218 = vmatprep.subr.mxu0 0.0
      %1219 = vmatpush1.msra.mxu0 0.0
      %1220 = vmatprep.subr.mxu0 %v1188
      %1221 = vmatpush1.msra.mxu0 %v1185
      %1222 = vmatprep.subr.mxu0 0.0
      %1223 = vmatpush2.msra.mxu0 0.0
      %1224 = vmatprep.subr.mxu0 0.0
      %1225 = vmatpush2.msra.mxu0 0.0
      %1226 = vmatprep.subr.mxu0 0.0
      %1227 = vmatpush2.msra.mxu0 0.0
      %1228 = vmatprep.subr.mxu0 0.0
      %1229 = vmatpush2.msra.mxu0 0.0
      %1230 = vmatprep.subr.mxu0 0.0
      %1231 = vmatpush2.msra.mxu0 0.0
      %1232 = vmatprep.subr.mxu0 0.0
      %1233 = vmatpush2.msra.mxu0 0.0
      %1234 = vmatprep.subr.mxu0 0.0
      %1235 = vmatpush2.msra.mxu0 0.0
      %1236 = vmatprep.subr.mxu0 0.0
      %1237 = vmatpush2.msra.mxu0 0.0
      %1238 = vmatprep.subr.mxu0 0.0
      %1239 = vmatpush2.msra.mxu0 0.0
      %1240 = vmatprep.subr.mxu0 0.0
      %1241 = vmatpush2.msra.mxu0 0.0
      %1242 = vmatprep.subr.mxu0 0.0
      %1243 = vmatpush2.msra.mxu0 0.0
      %1244 = vmatprep.subr.mxu0 0.0
      %1245 = vmatpush2.msra.mxu0 0.0
      %1246 = vmatprep.subr.mxu0 0.0
      %1247 = vmatpush2.msra.mxu0 0.0
      %1248 = vmatprep.subr.mxu0 0.0
      %1249 = vmatpush2.msra.mxu0 0.0
      %1250 = vmatprep.subr.mxu0 0.0
      %1251 = vmatpush2.msra.mxu0 0.0
      %1252 = vmatprep.subr.mxu0 0.0
      %1253 = vmatpush2.msra.mxu0 0.0
      %1254 = vmatprep.mubr.f32.mxu0 0.0
      %1255 = vmatmul.mubr.f32.gmra.mxu0 %v1182
      %v1256 = vpop.f32.mrf.mxu0
      %v1257 = vadd.f32 0.0, %v1256
      %v1258 = vpop.f32.mrf.mxu0
      %v1259 = vadd.f32 0.0, %v1258
      %1260 = vdwg.mxu0
      %v1262 = vsel %vm336, %v1178, 0
      %v1265 = vsel %vm340, %v1142, 0
      %v1268 = vsel %vm340, %v1143, 0
      %1270 = vmatprep.subr.mxu0 0.0
      %1271 = vmatpush1.msra.mxu0 0.0
      %1272 = vmatprep.subr.mxu0 0.0
      %1273 = vmatpush1.msra.mxu0 0.0
      %1274 = vmatprep.subr.mxu0 0.0
      %1275 = vmatpush1.msra.mxu0 0.0
      %1276 = vmatprep.subr.mxu0 0.0
      %1277 = vmatpush1.msra.mxu0 0.0
      %1278 = vmatprep.subr.mxu0 0.0
      %1279 = vmatpush1.msra.mxu0 0.0
      %1280 = vmatprep.subr.mxu0 0.0
      %1281 = vmatpush1.msra.mxu0 0.0
      %1282 = vmatprep.subr.mxu0 0.0
      %1283 = vmatpush1.msra.mxu0 0.0
      %1284 = vmatprep.subr.mxu0 0.0
      %1285 = vmatpush1.msra.mxu0 0.0
      %1286 = vmatprep.subr.mxu0 0.0
      %1287 = vmatpush1.msra.mxu0 0.0
      %1288 = vmatprep.subr.mxu0 0.0
      %1289 = vmatpush1.msra.mxu0 0.0
      %1290 = vmatprep.subr.mxu0 0.0
      %1291 = vmatpush1.msra.mxu0 0.0
      %1292 = vmatprep.subr.mxu0 0.0
      %1293 = vmatpush1.msra.mxu0 0.0
      %1294 = vmatprep.subr.mxu0 0.0
      %1295 = vmatpush1.msra.mxu0 0.0
      %1296 = vmatprep.subr.mxu0 0.0
      %1297 = vmatpush1.msra.mxu0 0.0
      %1298 = vmatprep.subr.mxu0 0.0
      %1299 = vmatpush1.msra.mxu0 0.0
      %1300 = vmatprep.subr.mxu0 %v1268
      %1301 = vmatpush1.msra.mxu0 %v1265
      %1302 = vmatprep.subr.mxu0 0.0
      %1303 = vmatpush2.msra.mxu0 0.0
      %1304 = vmatprep.subr.mxu0 0.0
      %1305 = vmatpush2.msra.mxu0 0.0
      %1306 = vmatprep.subr.mxu0 0.0
      %1307 = vmatpush2.msra.mxu0 0.0
      %1308 = vmatprep.subr.mxu0 0.0
      %1309 = vmatpush2.msra.mxu0 0.0
      %1310 = vmatprep.subr.mxu0 0.0
      %1311 = vmatpush2.msra.mxu0 0.0
      %1312 = vmatprep.subr.mxu0 0.0
      %1313 = vmatpush2.msra.mxu0 0.0
      %1314 = vmatprep.subr.mxu0 0.0
      %1315 = vmatpush2.msra.mxu0 0.0
      %1316 = vmatprep.subr.mxu0 0.0
      %1317 = vmatpush2.msra.mxu0 0.0
      %1318 = vmatprep.subr.mxu0 0.0
      %1319 = vmatpush2.msra.mxu0 0.0
      %1320 = vmatprep.subr.mxu0 0.0
      %1321 = vmatpush2.msra.mxu0 0.0
      %1322 = vmatprep.subr.mxu0 0.0
      %1323 = vmatpush2.msra.mxu0 0.0
      %1324 = vmatprep.subr.mxu0 0.0
      %1325 = vmatpush2.msra.mxu0 0.0
      %1326 = vmatprep.subr.mxu0 0.0
      %1327 = vmatpush2.msra.mxu0 0.0
      %1328 = vmatprep.subr.mxu0 0.0
      %1329 = vmatpush2.msra.mxu0 0.0
      %1330 = vmatprep.subr.mxu0 0.0
      %1331 = vmatpush2.msra.mxu0 0.0
      %1332 = vmatprep.subr.mxu0 0.0
      %1333 = vmatpush2.msra.mxu0 0.0
      %1334 = vmatprep.mubr.f32.mxu0 0.0
      %1335 = vmatmul.mubr.f32.gmra.mxu0 %v1262
      %v1336 = vpop.f32.mrf.mxu0
      %v1337 = vadd.f32 %v1257, %v1336
      %v1338 = vpop.f32.mrf.mxu0
      %v1339 = vadd.f32 %v1259, %v1338
      %1340 = vdwg.mxu0
      %s1341 = scalar_lea.vmem %s3, 8
      %v1342 = vld [vmem:[%s1341] sm:$0xf]
      %v1344 = vsel %vm336, %v1342, 0
      %v1347 = vsel %vm340, %v1144, 0
      %v1350 = vsel %vm340, %v1145, 0
      %1352 = vmatprep.subr.mxu0 0.0
      %1353 = vmatpush1.msra.mxu0 0.0
      %1354 = vmatprep.subr.mxu0 0.0
      %1355 = vmatpush1.msra.mxu0 0.0
      %1356 = vmatprep.subr.mxu0 0.0
      %1357 = vmatpush1.msra.mxu0 0.0
      %1358 = vmatprep.subr.mxu0 0.0
      %1359 = vmatpush1.msra.mxu0 0.0
      %1360 = vmatprep.subr.mxu0 0.0
      %1361 = vmatpush1.msra.mxu0 0.0
      %1362 = vmatprep.subr.mxu0 0.0
      %1363 = vmatpush1.msra.mxu0 0.0
      %1364 = vmatprep.subr.mxu0 0.0
      %1365 = vmatpush1.msra.mxu0 0.0
      %1366 = vmatprep.subr.mxu0 0.0
      %1367 = vmatpush1.msra.mxu0 0.0
      %1368 = vmatprep.subr.mxu0 0.0
      %1369 = vmatpush1.msra.mxu0 0.0
      %1370 = vmatprep.subr.mxu0 0.0
      %1371 = vmatpush1.msra.mxu0 0.0
      %1372 = vmatprep.subr.mxu0 0.0
      %1373 = vmatpush1.msra.mxu0 0.0
      %1374 = vmatprep.subr.mxu0 0.0
      %1375 = vmatpush1.msra.mxu0 0.0
      %1376 = vmatprep.subr.mxu0 0.0
      %1377 = vmatpush1.msra.mxu0 0.0
      %1378 = vmatprep.subr.mxu0 0.0
      %1379 = vmatpush1.msra.mxu0 0.0
      %1380 = vmatprep.subr.mxu0 0.0
      %1381 = vmatpush1.msra.mxu0 0.0
      %1382 = vmatprep.subr.mxu0 %v1350
      %1383 = vmatpush1.msra.mxu0 %v1347
      %1384 = vmatprep.subr.mxu0 0.0
      %1385 = vmatpush2.msra.mxu0 0.0
      %1386 = vmatprep.subr.mxu0 0.0
      %1387 = vmatpush2.msra.mxu0 0.0
      %1388 = vmatprep.subr.mxu0 0.0
      %1389 = vmatpush2.msra.mxu0 0.0
      %1390 = vmatprep.subr.mxu0 0.0
      %1391 = vmatpush2.msra.mxu0 0.0
      %1392 = vmatprep.subr.mxu0 0.0
      %1393 = vmatpush2.msra.mxu0 0.0
      %1394 = vmatprep.subr.mxu0 0.0
      %1395 = vmatpush2.msra.mxu0 0.0
      %1396 = vmatprep.subr.mxu0 0.0
      %1397 = vmatpush2.msra.mxu0 0.0
      %1398 = vmatprep.subr.mxu0 0.0
      %1399 = vmatpush2.msra.mxu0 0.0
      %1400 = vmatprep.subr.mxu0 0.0
      %1401 = vmatpush2.msra.mxu0 0.0
      %1402 = vmatprep.subr.mxu0 0.0
      %1403 = vmatpush2.msra.mxu0 0.0
      %1404 = vmatprep.subr.mxu0 0.0
      %1405 = vmatpush2.msra.mxu0 0.0
      %1406 = vmatprep.subr.mxu0 0.0
      %1407 = vmatpush2.msra.mxu0 0.0
      %1408 = vmatprep.subr.mxu0 0.0
      %1409 = vmatpush2.msra.mxu0 0.0
      %1410 = vmatprep.subr.mxu0 0.0
      %1411 = vmatpush2.msra.mxu0 0.0
      %1412 = vmatprep.subr.mxu0 0.0
      %1413 = vmatpush2.msra.mxu0 0.0
      %1414 = vmatprep.subr.mxu0 0.0
      %1415 = vmatpush2.msra.mxu0 0.0
      %1416 = vmatprep.mubr.f32.mxu0 0.0
      %1417 = vmatmul.mubr.f32.gmra.mxu0 %v1344
      %v1418 = vpop.f32.mrf.mxu0
      %v1419 = vadd.f32 0.0, %v1418
      %v1420 = vpop.f32.mrf.mxu0
      %v1421 = vadd.f32 0.0, %v1420
      %1422 = vdwg.mxu0
      %v1423 = vadd.f32 %v1337, %v1419
      %v1424 = vadd.f32 %v1339, %v1421
      %s1425 = scalar_lea.vmem %s3, 12
      %v1426 = vld [vmem:[%s1425] sm:$0xf]
      %v1428 = vsel %vm336, %v1426, 0
      %v1431 = vsel %vm340, %v1158, 0
      %v1434 = vsel %vm340, %v1159, 0
      %1436 = vmatprep.subr.mxu0 0.0
      %1437 = vmatpush1.msra.mxu0 0.0
      %1438 = vmatprep.subr.mxu0 0.0
      %1439 = vmatpush1.msra.mxu0 0.0
      %1440 = vmatprep.subr.mxu0 0.0
      %1441 = vmatpush1.msra.mxu0 0.0
      %1442 = vmatprep.subr.mxu0 0.0
      %1443 = vmatpush1.msra.mxu0 0.0
      %1444 = vmatprep.subr.mxu0 0.0
      %1445 = vmatpush1.msra.mxu0 0.0
      %1446 = vmatprep.subr.mxu0 0.0
      %1447 = vmatpush1.msra.mxu0 0.0
      %1448 = vmatprep.subr.mxu0 0.0
      %1449 = vmatpush1.msra.mxu0 0.0
      %1450 = vmatprep.subr.mxu0 0.0
      %1451 = vmatpush1.msra.mxu0 0.0
      %1452 = vmatprep.subr.mxu0 0.0
      %1453 = vmatpush1.msra.mxu0 0.0
      %1454 = vmatprep.subr.mxu0 0.0
      %1455 = vmatpush1.msra.mxu0 0.0
      %1456 = vmatprep.subr.mxu0 0.0
      %1457 = vmatpush1.msra.mxu0 0.0
      %1458 = vmatprep.subr.mxu0 0.0
      %1459 = vmatpush1.msra.mxu0 0.0
      %1460 = vmatprep.subr.mxu0 0.0
      %1461 = vmatpush1.msra.mxu0 0.0
      %1462 = vmatprep.subr.mxu0 0.0
      %1463 = vmatpush1.msra.mxu0 0.0
      %1464 = vmatprep.subr.mxu0 0.0
      %1465 = vmatpush1.msra.mxu0 0.0
      %1466 = vmatprep.subr.mxu0 %v1434
      %1467 = vmatpush1.msra.mxu0 %v1431
      %1468 = vmatprep.subr.mxu0 0.0
      %1469 = vmatpush2.msra.mxu0 0.0
      %1470 = vmatprep.subr.mxu0 0.0
      %1471 = vmatpush2.msra.mxu0 0.0
      %1472 = vmatprep.subr.mxu0 0.0
      %1473 = vmatpush2.msra.mxu0 0.0
      %1474 = vmatprep.subr.mxu0 0.0
      %1475 = vmatpush2.msra.mxu0 0.0
      %1476 = vmatprep.subr.mxu0 0.0
      %1477 = vmatpush2.msra.mxu0 0.0
      %1478 = vmatprep.subr.mxu0 0.0
      %1479 = vmatpush2.msra.mxu0 0.0
      %1480 = vmatprep.subr.mxu0 0.0
      %1481 = vmatpush2.msra.mxu0 0.0
      %1482 = vmatprep.subr.mxu0 0.0
      %1483 = vmatpush2.msra.mxu0 0.0
      %1484 = vmatprep.subr.mxu0 0.0
      %1485 = vmatpush2.msra.mxu0 0.0
      %1486 = vmatprep.subr.mxu0 0.0
      %1487 = vmatpush2.msra.mxu0 0.0
      %1488 = vmatprep.subr.mxu0 0.0
      %1489 = vmatpush2.msra.mxu0 0.0
      %1490 = vmatprep.subr.mxu0 0.0
      %1491 = vmatpush2.msra.mxu0 0.0
      %1492 = vmatprep.subr.mxu0 0.0
      %1493 = vmatpush2.msra.mxu0 0.0
      %1494 = vmatprep.subr.mxu0 0.0
      %1495 = vmatpush2.msra.mxu0 0.0
      %1496 = vmatprep.subr.mxu0 0.0
      %1497 = vmatpush2.msra.mxu0 0.0
      %1498 = vmatprep.subr.mxu0 0.0
      %1499 = vmatpush2.msra.mxu0 0.0
      %1500 = vmatprep.mubr.f32.mxu0 0.0
      %1501 = vmatmul.mubr.f32.gmra.mxu0 %v1428
      %v1502 = vpop.f32.mrf.mxu0
      %v1503 = vadd.f32 0.0, %v1502
      %v1504 = vpop.f32.mrf.mxu0
      %v1505 = vadd.f32 0.0, %v1504
      %1506 = vdwg.mxu0
      %v1507 = vadd.f32 %v1423, %v1503
      %v1508 = vadd.f32 %v1424, %v1505
      %s1509 = scalar_lea.vmem %s3, 16
      %v1510 = vld [vmem:[%s1509] sm:$0xf]
      %v1512 = vsel %vm336, %v1510, 0
      %v1515 = vsel %vm340, %v1112, 0
      %v1518 = vsel %vm340, %v1113, 0
      %1520 = vmatprep.subr.mxu0 0.0
      %1521 = vmatpush1.msra.mxu0 0.0
      %1522 = vmatprep.subr.mxu0 0.0
      %1523 = vmatpush1.msra.mxu0 0.0
      %1524 = vmatprep.subr.mxu0 0.0
      %1525 = vmatpush1.msra.mxu0 0.0
      %1526 = vmatprep.subr.mxu0 0.0
      %1527 = vmatpush1.msra.mxu0 0.0
      %1528 = vmatprep.subr.mxu0 0.0
      %1529 = vmatpush1.msra.mxu0 0.0
      %1530 = vmatprep.subr.mxu0 0.0
      %1531 = vmatpush1.msra.mxu0 0.0
      %1532 = vmatprep.subr.mxu0 0.0
      %1533 = vmatpush1.msra.mxu0 0.0
      %1534 = vmatprep.subr.mxu0 0.0
      %1535 = vmatpush1.msra.mxu0 0.0
      %1536 = vmatprep.subr.mxu0 0.0
      %1537 = vmatpush1.msra.mxu0 0.0
      %1538 = vmatprep.subr.mxu0 0.0
      %1539 = vmatpush1.msra.mxu0 0.0
      %1540 = vmatprep.subr.mxu0 0.0
      %1541 = vmatpush1.msra.mxu0 0.0
      %1542 = vmatprep.subr.mxu0 0.0
      %1543 = vmatpush1.msra.mxu0 0.0
      %1544 = vmatprep.subr.mxu0 0.0
      %1545 = vmatpush1.msra.mxu0 0.0
      %1546 = vmatprep.subr.mxu0 0.0
      %1547 = vmatpush1.msra.mxu0 0.0
      %1548 = vmatprep.subr.mxu0 0.0
      %1549 = vmatpush1.msra.mxu0 0.0
      %1550 = vmatprep.subr.mxu0 %v1518
      %1551 = vmatpush1.msra.mxu0 %v1515
      %1552 = vmatprep.subr.mxu0 0.0
      %1553 = vmatpush2.msra.mxu0 0.0
      %1554 = vmatprep.subr.mxu0 0.0
      %1555 = vmatpush2.msra.mxu0 0.0
      %1556 = vmatprep.subr.mxu0 0.0
      %1557 = vmatpush2.msra.mxu0 0.0
      %1558 = vmatprep.subr.mxu0 0.0
      %1559 = vmatpush2.msra.mxu0 0.0
      %1560 = vmatprep.subr.mxu0 0.0
      %1561 = vmatpush2.msra.mxu0 0.0
      %1562 = vmatprep.subr.mxu0 0.0
      %1563 = vmatpush2.msra.mxu0 0.0
      %1564 = vmatprep.subr.mxu0 0.0
      %1565 = vmatpush2.msra.mxu0 0.0
      %1566 = vmatprep.subr.mxu0 0.0
      %1567 = vmatpush2.msra.mxu0 0.0
      %1568 = vmatprep.subr.mxu0 0.0
      %1569 = vmatpush2.msra.mxu0 0.0
      %1570 = vmatprep.subr.mxu0 0.0
      %1571 = vmatpush2.msra.mxu0 0.0
      %1572 = vmatprep.subr.mxu0 0.0
      %1573 = vmatpush2.msra.mxu0 0.0
      %1574 = vmatprep.subr.mxu0 0.0
      %1575 = vmatpush2.msra.mxu0 0.0
      %1576 = vmatprep.subr.mxu0 0.0
      %1577 = vmatpush2.msra.mxu0 0.0
      %1578 = vmatprep.subr.mxu0 0.0
      %1579 = vmatpush2.msra.mxu0 0.0
      %1580 = vmatprep.subr.mxu0 0.0
      %1581 = vmatpush2.msra.mxu0 0.0
      %1582 = vmatprep.subr.mxu0 0.0
      %1583 = vmatpush2.msra.mxu0 0.0
      %1584 = vmatprep.mubr.f32.mxu0 0.0
      %1585 = vmatmul.mubr.f32.gmra.mxu0 %v1512
      %v1586 = vpop.f32.mrf.mxu0
      %v1587 = vadd.f32 0.0, %v1586
      %v1588 = vpop.f32.mrf.mxu0
      %v1589 = vadd.f32 0.0, %v1588
      %1590 = vdwg.mxu0
      %v1591 = vadd.f32 %v1507, %v1587
      %v1592 = vadd.f32 %v1508, %v1589
      %s1593 = scalar_lea.vmem %s3, 20
      %v1594 = vld [vmem:[%s1593] sm:$0xf]
      %v1596 = vsel %vm336, %v1594, 0
      %v1599 = vsel %vm340, %v1160, 0
      %v1602 = vsel %vm340, %v1161, 0
      %1604 = vmatprep.subr.mxu0 0.0
      %1605 = vmatpush1.msra.mxu0 0.0
      %1606 = vmatprep.subr.mxu0 0.0
      %1607 = vmatpush1.msra.mxu0 0.0
      %1608 = vmatprep.subr.mxu0 0.0
      %1609 = vmatpush1.msra.mxu0 0.0
      %1610 = vmatprep.subr.mxu0 0.0
      %1611 = vmatpush1.msra.mxu0 0.0
      %1612 = vmatprep.subr.mxu0 0.0
      %1613 = vmatpush1.msra.mxu0 0.0
      %1614 = vmatprep.subr.mxu0 0.0
      %1615 = vmatpush1.msra.mxu0 0.0
      %1616 = vmatprep.subr.mxu0 0.0
      %1617 = vmatpush1.msra.mxu0 0.0
      %1618 = vmatprep.subr.mxu0 0.0
      %1619 = vmatpush1.msra.mxu0 0.0
      %1620 = vmatprep.subr.mxu0 0.0
      %1621 = vmatpush1.msra.mxu0 0.0
      %1622 = vmatprep.subr.mxu0 0.0
      %1623 = vmatpush1.msra.mxu0 0.0
      %1624 = vmatprep.subr.mxu0 0.0
      %1625 = vmatpush1.msra.mxu0 0.0
      %1626 = vmatprep.subr.mxu0 0.0
      %1627 = vmatpush1.msra.mxu0 0.0
      %1628 = vmatprep.subr.mxu0 0.0
      %1629 = vmatpush1.msra.mxu0 0.0
      %1630 = vmatprep.subr.mxu0 0.0
      %1631 = vmatpush1.msra.mxu0 0.0
      %1632 = vmatprep.subr.mxu0 0.0
      %1633 = vmatpush1.msra.mxu0 0.0
      %1634 = vmatprep.subr.mxu0 %v1602
      %1635 = vmatpush1.msra.mxu0 %v1599
      %1636 = vmatprep.subr.mxu0 0.0
      %1637 = vmatpush2.msra.mxu0 0.0
      %1638 = vmatprep.subr.mxu0 0.0
      %1639 = vmatpush2.msra.mxu0 0.0
      %1640 = vmatprep.subr.mxu0 0.0
      %1641 = vmatpush2.msra.mxu0 0.0
      %1642 = vmatprep.subr.mxu0 0.0
      %1643 = vmatpush2.msra.mxu0 0.0
      %1644 = vmatprep.subr.mxu0 0.0
      %1645 = vmatpush2.msra.mxu0 0.0
      %1646 = vmatprep.subr.mxu0 0.0
      %1647 = vmatpush2.msra.mxu0 0.0
      %1648 = vmatprep.subr.mxu0 0.0
      %1649 = vmatpush2.msra.mxu0 0.0
      %1650 = vmatprep.subr.mxu0 0.0
      %1651 = vmatpush2.msra.mxu0 0.0
      %1652 = vmatprep.subr.mxu0 0.0
      %1653 = vmatpush2.msra.mxu0 0.0
      %1654 = vmatprep.subr.mxu0 0.0
      %1655 = vmatpush2.msra.mxu0 0.0
      %1656 = vmatprep.subr.mxu0 0.0
      %1657 = vmatpush2.msra.mxu0 0.0
      %1658 = vmatprep.subr.mxu0 0.0
      %1659 = vmatpush2.msra.mxu0 0.0
      %1660 = vmatprep.subr.mxu0 0.0
      %1661 = vmatpush2.msra.mxu0 0.0
      %1662 = vmatprep.subr.mxu0 0.0
      %1663 = vmatpush2.msra.mxu0 0.0
      %1664 = vmatprep.subr.mxu0 0.0
      %1665 = vmatpush2.msra.mxu0 0.0
      %1666 = vmatprep.subr.mxu0 0.0
      %1667 = vmatpush2.msra.mxu0 0.0
      %1668 = vmatprep.mubr.f32.mxu0 0.0
      %1669 = vmatmul.mubr.f32.gmra.mxu0 %v1596
      %v1670 = vpop.f32.mrf.mxu0
      %v1671 = vadd.f32 0.0, %v1670
      %v1672 = vpop.f32.mrf.mxu0
      %v1673 = vadd.f32 0.0, %v1672
      %1674 = vdwg.mxu0
      %v1675 = vadd.f32 %v1591, %v1671
      %v1676 = vadd.f32 %v1592, %v1673
      %s1677 = scalar_lea.vmem %s3, 24
      %v1678 = vld [vmem:[%s1677] sm:$0xf]
      %v1680 = vsel %vm336, %v1678, 0
      %v1683 = vsel %vm340, %v1174, 0
      %v1686 = vsel %vm340, %v1175, 0
      %1688 = vmatprep.subr.mxu0 0.0
      %1689 = vmatpush1.msra.mxu0 0.0
      %1690 = vmatprep.subr.mxu0 0.0
      %1691 = vmatpush1.msra.mxu0 0.0
      %1692 = vmatprep.subr.mxu0 0.0
      %1693 = vmatpush1.msra.mxu0 0.0
      %1694 = vmatprep.subr.mxu0 0.0
      %1695 = vmatpush1.msra.mxu0 0.0
      %1696 = vmatprep.subr.mxu0 0.0
      %1697 = vmatpush1.msra.mxu0 0.0
      %1698 = vmatprep.subr.mxu0 0.0
      %1699 = vmatpush1.msra.mxu0 0.0
      %1700 = vmatprep.subr.mxu0 0.0
      %1701 = vmatpush1.msra.mxu0 0.0
      %1702 = vmatprep.subr.mxu0 0.0
      %1703 = vmatpush1.msra.mxu0 0.0
      %1704 = vmatprep.subr.mxu0 0.0
      %1705 = vmatpush1.msra.mxu0 0.0
      %1706 = vmatprep.subr.mxu0 0.0
      %1707 = vmatpush1.msra.mxu0 0.0
      %1708 = vmatprep.subr.mxu0 0.0
      %1709 = vmatpush1.msra.mxu0 0.0
      %1710 = vmatprep.subr.mxu0 0.0
      %1711 = vmatpush1.msra.mxu0 0.0
      %1712 = vmatprep.subr.mxu0 0.0
      %1713 = vmatpush1.msra.mxu0 0.0
      %1714 = vmatprep.subr.mxu0 0.0
      %1715 = vmatpush1.msra.mxu0 0.0
      %1716 = vmatprep.subr.mxu0 0.0
      %1717 = vmatpush1.msra.mxu0 0.0
      %1718 = vmatprep.subr.mxu0 %v1686
      %1719 = vmatpush1.msra.mxu0 %v1683
      %1720 = vmatprep.subr.mxu0 0.0
      %1721 = vmatpush2.msra.mxu0 0.0
      %1722 = vmatprep.subr.mxu0 0.0
      %1723 = vmatpush2.msra.mxu0 0.0
      %1724 = vmatprep.subr.mxu0 0.0
      %1725 = vmatpush2.msra.mxu0 0.0
      %1726 = vmatprep.subr.mxu0 0.0
      %1727 = vmatpush2.msra.mxu0 0.0
      %1728 = vmatprep.subr.mxu0 0.0
      %1729 = vmatpush2.msra.mxu0 0.0
      %1730 = vmatprep.subr.mxu0 0.0
      %1731 = vmatpush2.msra.mxu0 0.0
      %1732 = vmatprep.subr.mxu0 0.0
      %1733 = vmatpush2.msra.mxu0 0.0
      %1734 = vmatprep.subr.mxu0 0.0
      %1735 = vmatpush2.msra.mxu0 0.0
      %1736 = vmatprep.subr.mxu0 0.0
      %1737 = vmatpush2.msra.mxu0 0.0
      %1738 = vmatprep.subr.mxu0 0.0
      %1739 = vmatpush2.msra.mxu0 0.0
      %1740 = vmatprep.subr.mxu0 0.0
      %1741 = vmatpush2.msra.mxu0 0.0
      %1742 = vmatprep.subr.mxu0 0.0
      %1743 = vmatpush2.msra.mxu0 0.0
      %1744 = vmatprep.subr.mxu0 0.0
      %1745 = vmatpush2.msra.mxu0 0.0
      %1746 = vmatprep.subr.mxu0 0.0
      %1747 = vmatpush2.msra.mxu0 0.0
      %1748 = vmatprep.subr.mxu0 0.0
      %1749 = vmatpush2.msra.mxu0 0.0
      %1750 = vmatprep.subr.mxu0 0.0
      %1751 = vmatpush2.msra.mxu0 0.0
      %1752 = vmatprep.mubr.f32.mxu0 0.0
      %1753 = vmatmul.mubr.f32.gmra.mxu0 %v1680
      %v1754 = vpop.f32.mrf.mxu0
      %v1755 = vadd.f32 0.0, %v1754
      %v1756 = vpop.f32.mrf.mxu0
      %v1757 = vadd.f32 0.0, %v1756
      %1758 = vdwg.mxu0
      %v1759 = vadd.f32 %v1675, %v1755
      %v1760 = vadd.f32 %v1676, %v1757
      %s1761 = scalar_lea.vmem %s3, 28
      %v1762 = vld [vmem:[%s1761] sm:$0xf]
      %v1764 = vsel %vm336, %v1762, 0
      %v1767 = vsel %vm340, %v1128, 0
      %v1770 = vsel %vm340, %v1129, 0
      %1772 = vmatprep.subr.mxu0 0.0
      %1773 = vmatpush1.msra.mxu0 0.0
      %1774 = vmatprep.subr.mxu0 0.0
      %1775 = vmatpush1.msra.mxu0 0.0
      %1776 = vmatprep.subr.mxu0 0.0
      %1777 = vmatpush1.msra.mxu0 0.0
      %1778 = vmatprep.subr.mxu0 0.0
      %1779 = vmatpush1.msra.mxu0 0.0
      %1780 = vmatprep.subr.mxu0 0.0
      %1781 = vmatpush1.msra.mxu0 0.0
      %1782 = vmatprep.subr.mxu0 0.0
      %1783 = vmatpush1.msra.mxu0 0.0
      %1784 = vmatprep.subr.mxu0 0.0
      %1785 = vmatpush1.msra.mxu0 0.0
      %1786 = vmatprep.subr.mxu0 0.0
      %1787 = vmatpush1.msra.mxu0 0.0
      %1788 = vmatprep.subr.mxu0 0.0
      %1789 = vmatpush1.msra.mxu0 0.0
      %1790 = vmatprep.subr.mxu0 0.0
      %1791 = vmatpush1.msra.mxu0 0.0
      %1792 = vmatprep.subr.mxu0 0.0
      %1793 = vmatpush1.msra.mxu0 0.0
      %1794 = vmatprep.subr.mxu0 0.0
      %1795 = vmatpush1.msra.mxu0 0.0
      %1796 = vmatprep.subr.mxu0 0.0
      %1797 = vmatpush1.msra.mxu0 0.0
      %1798 = vmatprep.subr.mxu0 0.0
      %1799 = vmatpush1.msra.mxu0 0.0
      %1800 = vmatprep.subr.mxu0 0.0
      %1801 = vmatpush1.msra.mxu0 0.0
      %1802 = vmatprep.subr.mxu0 %v1770
      %1803 = vmatpush1.msra.mxu0 %v1767
      %1804 = vmatprep.subr.mxu0 0.0
      %1805 = vmatpush2.msra.mxu0 0.0
      %1806 = vmatprep.subr.mxu0 0.0
      %1807 = vmatpush2.msra.mxu0 0.0
      %1808 = vmatprep.subr.mxu0 0.0
      %1809 = vmatpush2.msra.mxu0 0.0
      %1810 = vmatprep.subr.mxu0 0.0
      %1811 = vmatpush2.msra.mxu0 0.0
      %1812 = vmatprep.subr.mxu0 0.0
      %1813 = vmatpush2.msra.mxu0 0.0
      %1814 = vmatprep.subr.mxu0 0.0
      %1815 = vmatpush2.msra.mxu0 0.0
      %1816 = vmatprep.subr.mxu0 0.0
      %1817 = vmatpush2.msra.mxu0 0.0
      %1818 = vmatprep.subr.mxu0 0.0
      %1819 = vmatpush2.msra.mxu0 0.0
      %1820 = vmatprep.subr.mxu0 0.0
      %1821 = vmatpush2.msra.mxu0 0.0
      %1822 = vmatprep.subr.mxu0 0.0
      %1823 = vmatpush2.msra.mxu0 0.0
      %1824 = vmatprep.subr.mxu0 0.0
      %1825 = vmatpush2.msra.mxu0 0.0
      %1826 = vmatprep.subr.mxu0 0.0
      %1827 = vmatpush2.msra.mxu0 0.0
      %1828 = vmatprep.subr.mxu0 0.0
      %1829 = vmatpush2.msra.mxu0 0.0
      %1830 = vmatprep.subr.mxu0 0.0
      %1831 = vmatpush2.msra.mxu0 0.0
      %1832 = vmatprep.subr.mxu0 0.0
      %1833 = vmatpush2.msra.mxu0 0.0
      %1834 = vmatprep.subr.mxu0 0.0
      %1835 = vmatpush2.msra.mxu0 0.0
      %1836 = vmatprep.mubr.f32.mxu0 0.0
      %1837 = vmatmul.mubr.f32.gmra.mxu0 %v1764
      %v1838 = vpop.f32.mrf.mxu0
      %v1839 = vadd.f32 0.0, %v1838
      %v1840 = vpop.f32.mrf.mxu0
      %v1841 = vadd.f32 0.0, %v1840
      %1842 = vdwg.mxu0
      %v1843 = vadd.f32 %v1759, %v1839
      %v1844 = vadd.f32 %v1760, %v1841
      %s1845 = scalar_lea.vmem %s3, 32
      %v1846 = vld [vmem:[%s1845] sm:$0xf]
      %v1848 = vsel %vm336, %v1846, 0
      %v1851 = vsel %vm340, %v1176, 0
      %v1854 = vsel %vm340, %v1177, 0
      %1856 = vmatprep.subr.mxu0 0.0
      %1857 = vmatpush1.msra.mxu0 0.0
      %1858 = vmatprep.subr.mxu0 0.0
      %1859 = vmatpush1.msra.mxu0 0.0
      %1860 = vmatprep.subr.mxu0 0.0
      %1861 = vmatpush1.msra.mxu0 0.0
      %1862 = vmatprep.subr.mxu0 0.0
      %1863 = vmatpush1.msra.mxu0 0.0
      %1864 = vmatprep.subr.mxu0 0.0
      %1865 = vmatpush1.msra.mxu0 0.0
      %1866 = vmatprep.subr.mxu0 0.0
      %1867 = vmatpush1.msra.mxu0 0.0
      %1868 = vmatprep.subr.mxu0 0.0
      %1869 = vmatpush1.msra.mxu0 0.0
      %1870 = vmatprep.subr.mxu0 0.0
      %1871 = vmatpush1.msra.mxu0 0.0
      %1872 = vmatprep.subr.mxu0 0.0
      %1873 = vmatpush1.msra.mxu0 0.0
      %1874 = vmatprep.subr.mxu0 0.0
      %1875 = vmatpush1.msra.mxu0 0.0
      %1876 = vmatprep.subr.mxu0 0.0
      %1877 = vmatpush1.msra.mxu0 0.0
      %1878 = vmatprep.subr.mxu0 0.0
      %1879 = vmatpush1.msra.mxu0 0.0
      %1880 = vmatprep.subr.mxu0 0.0
      %1881 = vmatpush1.msra.mxu0 0.0
      %1882 = vmatprep.subr.mxu0 0.0
      %1883 = vmatpush1.msra.mxu0 0.0
      %1884 = vmatprep.subr.mxu0 0.0
      %1885 = vmatpush1.msra.mxu0 0.0
      %1886 = vmatprep.subr.mxu0 %v1854
      %1887 = vmatpush1.msra.mxu0 %v1851
      %1888 = vmatprep.subr.mxu0 0.0
      %1889 = vmatpush2.msra.mxu0 0.0
      %1890 = vmatprep.subr.mxu0 0.0
      %1891 = vmatpush2.msra.mxu0 0.0
      %1892 = vmatprep.subr.mxu0 0.0
      %1893 = vmatpush2.msra.mxu0 0.0
      %1894 = vmatprep.subr.mxu0 0.0
      %1895 = vmatpush2.msra.mxu0 0.0
      %1896 = vmatprep.subr.mxu0 0.0
      %1897 = vmatpush2.msra.mxu0 0.0
      %1898 = vmatprep.subr.mxu0 0.0
      %1899 = vmatpush2.msra.mxu0 0.0
      %1900 = vmatprep.subr.mxu0 0.0
      %1901 = vmatpush2.msra.mxu0 0.0
      %1902 = vmatprep.subr.mxu0 0.0
      %1903 = vmatpush2.msra.mxu0 0.0
      %1904 = vmatprep.subr.mxu0 0.0
      %1905 = vmatpush2.msra.mxu0 0.0
      %1906 = vmatprep.subr.mxu0 0.0
      %1907 = vmatpush2.msra.mxu0 0.0
      %1908 = vmatprep.subr.mxu0 0.0
      %1909 = vmatpush2.msra.mxu0 0.0
      %1910 = vmatprep.subr.mxu0 0.0
      %1911 = vmatpush2.msra.mxu0 0.0
      %1912 = vmatprep.subr.mxu0 0.0
      %1913 = vmatpush2.msra.mxu0 0.0
      %1914 = vmatprep.subr.mxu0 0.0
      %1915 = vmatpush2.msra.mxu0 0.0
      %1916 = vmatprep.subr.mxu0 0.0
      %1917 = vmatpush2.msra.mxu0 0.0
      %1918 = vmatprep.subr.mxu0 0.0
      %1919 = vmatpush2.msra.mxu0 0.0
      %1920 = vmatprep.mubr.f32.mxu0 0.0
      %1921 = vmatmul.mubr.f32.gmra.mxu0 %v1848
      %v1922 = vpop.f32.mrf.mxu0
      %v1923 = vadd.f32 0.0, %v1922
      %v1924 = vpop.f32.mrf.mxu0
      %v1925 = vadd.f32 0.0, %v1924
      %1926 = vdwg.mxu0
      %v1927 = vadd.f32 %v1843, %v1923
      %v1928 = vadd.f32 %v1844, %v1925
      %1930 = vset.pattern.permute.xlu0 0
      %1931 = vperm.xlu0 %1930, %v227
      %v1932 = vpop.permute.xlu0 %1931
      %v1934 = vadd.f32 %v1927, %v1932
      %v1935 = vadd.f32 %v1928, %v1932
      %v1936 = vsel %vm340, %v1934, 0.0
      %v1937 = vsel %vm340, %v1935, 0.0
      %v1938 = vadd.f32 %v1936, %v1937
      %1939 = vadd.xlane.f32.xlu0 %v1938
      %v1940 = vpop.xlane.xlu0 %1939
      %v1941 = vmul.f32 %v1940, %v1096
      %v1942 = vsub.f32 %v1934, %v1941
      %v1943 = vsub.f32 %v1935, %v1941
      %v1944 = vmul.f32 %v1942, %v1942
      %v1945 = vmul.f32 %v1943, %v1943
      %v1946 = vsel %vm340, %v1944, 0.0
      %v1947 = vsel %vm340, %v1945, 0.0
      %v1948 = vadd.f32 %v1946, %v1947
      %1949 = vadd.xlane.f32.xlu0 %v1948
      %v1950 = vpop.xlane.xlu0 %1949
      %v1951 = vmul.f32 %v1950, %v1096
      %v1952 = vadd.f32 %v1951, 1e-05
      %v1953 = vrsqrt.pop %v1952
      %v1954 = vmul.f32 %v1942, %v1953
      %v1955 = vmul.f32 %v1943, %v1953
      %v1958 = vcombine.low %v1954, %v1955
      %v1960 = vadd.f32 %v225, %v1958
      %v1961 = vmax.f32 %v1960, 0.0
      %1962 = vst [vmem:[%s224] sm:$0xff] %v1961
      %p1963 = scmp.lt.s32.totalorder %s16, 1
      %s1964 = scalar_select %p1963, %s16, 1
      %s1965 = smul.addr %s1964, 2
      %s1966 = smul.addr %s1965, 4
      %s1967 = scalar_lea.vmem %s5, %s1966
      // Predicated region
      $region41: #{resblock_forward.1} parent=39 // pred_check
        %p1968 = pneg %p144
      $region42: #{resblock_forward.1} parent=39 // pred_check_branch
        %1970 = sbr.rel (%p1968) target = $region44
      $region43: #{resblock_forward.1} parent=39 // pred_region
        _
      $region44: #{resblock_forward.1} parent=39 // pred_fallthru
        _
    $region40: #{resblock_forward.1} parent=5 // pred_fallthru
      _
    %p1971 = scmp.le.s32.totalorder 2, %s11
    // Predicated region
    $region45: #{resblock_forward.1} parent=5 // pred_check
      %p1972 = pneg %p1971
    $region46: #{resblock_forward.1} parent=5 // pred_check_branch
      %1974 = sbr.rel (%p1972) target = $region48
    $region47: #{resblock_forward.1} parent=5 // pred_region
      %s1975 = ssub.s32 %s11, 2
      // Predicated region
      $region49: #{resblock_forward.1} parent=47 // pred_check
        %p1976 = pneg %p150
      $region50: #{resblock_forward.1} parent=47 // pred_check_branch
        %1978 = sbr.rel (%p1976) target = $region52
      $region51: #{resblock_forward.1} parent=47 // pred_region
        %p1979 = scmp.lt.s32.totalorder %s17, 1
        %s1980 = scalar_select %p1979, %s17, 1
        %s1981 = smul.addr %s1980, 2
        %s1982 = smul.addr %s1981, 4
        %s1983 = scalar_lea.vmem %s5, %s1982
      $region52: #{resblock_forward.1} parent=47 // pred_fallthru
        _
    $region48: #{resblock_forward.1} parent=5 // pred_fallthru
      _
  $region6: #{resblock_forward.1} parent=0 // loop_footer
    %s15 = sadd.s32 1, %s11
  $region7: #{resblock_forward.1} parent=0 // loop_footer_branch
    %10 = sbr.rel target = $region3
  $region8: #{resblock_forward.1} parent=0 // loop_exit
    _

</llo_original>
